<compile_context>
chip_gen: v6e
topology: v6e:2x2x1
jax: 0.10.0
libtpu: 0.0.40
codegen_flags: <defaults>
</compile_context>

<pallas_src>
import functools

import jax
import jax.numpy as jnp
import numpy as np
from jax.experimental import pallas as pl
from jax.experimental.pallas import tpu as pltpu


# Padded tile widths (MXU / lane friendly on v5e/v6e/v7x).
S_PAD = 128      # conv feature channels, s_dim -> 128
H1_PAD = 256     # per-head fc1/fc4 width, 200 -> 256
H2_PAD = 128     # per-head fc2/fc5 width, 100 -> 128


# ----------------------------------------------------------------------------
# Fused Pallas kernel: conv(im2col) + ReLU + mean-pool + both TD3 Q heads
# ----------------------------------------------------------------------------

def critic_fused_kernel(patches_ref, u_ref,
                        cw_ref, cb_ref,
                        w14s_ref, w14a_ref, b14_ref,
                        w2_ref, b2_ref, w5_ref, b5_ref,
                        w3_ref, w6_ref, b36_ref,
                        out_ref, *, tb, hw):
    """One batch tile of the full Critic forward.

    patches: (tb*hw, C*9) bf16      cw: (C*9, S_PAD) bf16      cb: (1, S_PAD) f32
    u:       (tb, a_dim) bf16
    w14s:    (S_PAD, 2*H1_PAD) bf16 (state rows of [w1|w4], zero-padded)
    w14a:    (a_dim, 2*H1_PAD) bf16 (action rows of [w1|w4])
    w2/w5:   (H1_PAD, H2_PAD) bf16  w3/w6: (H2_PAD, 2) bf16 (q1 in col 0, q2 in col 1)
    out:     (tb, 2) f32  -> [q1, q2]
    """
    # conv as im2col matmul (bf16 operands, f32 accumulate) + bias + ReLU
    y = jnp.dot(patches_ref[...], cw_ref[...],
                preferred_element_type=jnp.float32)               # (tb*hw, S_PAD)
    y = jnp.maximum(y + cb_ref[...], 0.0)

    # global average pool per batch element: f32 sum over H*W, scale by 1/HW
    feats = jnp.sum(y.reshape(tb, hw, S_PAD), axis=1) * (1.0 / hw)  # (tb, S_PAD)
    feats_bf = feats.astype(jnp.bfloat16)
    u = u_ref[...]

    # combined layer 1 of both heads; split state/action weights avoids concat
    h = (jnp.dot(feats_bf, w14s_ref[...], preferred_element_type=jnp.float32)
         + jnp.dot(u, w14a_ref[...], preferred_element_type=jnp.float32)
         + b14_ref[...])
    h = jnp.maximum(h, 0.0)                                       # (tb, 2*H1_PAD)
    h1 = h[:, :H1_PAD].astype(jnp.bfloat16)                       # head 1
    h2 = h[:, H1_PAD:].astype(jnp.bfloat16)                       # head 2

    # layer 2 per head
    g1 = jnp.maximum(jnp.dot(h1, w2_ref[...],
                             preferred_element_type=jnp.float32) + b2_ref[...], 0.0)
    g2 = jnp.maximum(jnp.dot(h2, w5_ref[...],
                             preferred_element_type=jnp.float32) + b5_ref[...], 0.0)

    # layer 3: both Q values into one lane-packed (tb, 2) store
    out_ref[...] = (jnp.dot(g1.astype(jnp.bfloat16), w3_ref[...],
                            preferred_element_type=jnp.float32)
                    + jnp.dot(g2.astype(jnp.bfloat16), w6_ref[...],
                              preferred_element_type=jnp.float32)
                    + b36_ref[...])


# ----------------------------------------------------------------------------
# Glue: im2col, parameter init (raw + padded/fused), forward wrapper
# ----------------------------------------------------------------------------

def im2col_3x3(x):
    """x: (B, C, H, W) NCHW -> patches (B*H*W, C*9), padding=1, stride=1.

    Flatten order is c*9 + (i*3+j), matching PyTorch weight.reshape(out,-1).T.
    """
    B, C, H, W = x.shape
    xp = jnp.pad(x, ((0, 0), (0, 0), (1, 1), (1, 1)))
    cols = [xp[:, :, i:i + H, j:j + W] for i in range(3) for j in range(3)]
    p = jnp.stack(cols, axis=2)                                  # (B, C, 9, H, W)
    p = p.transpose(0, 3, 4, 1, 2)                               # (B, H, W, C, 9)
    return p.reshape(B * H * W, C * 9)


def kaiming_normal(key, fan_in, shape):
    return ((2.0 / fan_in) ** 0.5) * jax.random.normal(key, shape, jnp.float32)


def init_params(key, c_in, s_dim, a_dim):
    """Mirrors Critic.initialize_weights(); returns (fused kernel params, raw f32 params)."""
    ks = jax.random.split(key, 7)
    d = s_dim + a_dim
    raw = {
        "conv_w": kaiming_normal(ks[0], c_in * 9, (c_in * 9, s_dim)),
        "w1": kaiming_normal(ks[1], d, (d, 200)),
        "w2": kaiming_normal(ks[2], 200, (200, 100)),
        "w3": kaiming_normal(ks[3], 100, (100, 1)),
        "w4": kaiming_normal(ks[4], d, (d, 200)),
        "w5": kaiming_normal(ks[5], 200, (200, 100)),
        "w6": kaiming_normal(ks[6], 100, (100, 1)),
    }
    # All biases are zero (nn.init.constant_(bias, 0)).

    # Padded / column-combined kernel weights, built once off the hot path.
    cw = jnp.zeros((c_in * 9, S_PAD), jnp.float32).at[:, :s_dim].set(raw["conv_w"])
    w14s = (jnp.zeros((S_PAD, 2 * H1_PAD), jnp.float32)
            .at[:s_dim, :200].set(raw["w1"][:s_dim])
            .at[:s_dim, H1_PAD:H1_PAD + 200].set(raw["w4"][:s_dim]))
    w14a = (jnp.zeros((a_dim, 2 * H1_PAD), jnp.float32)
            .at[:, :200].set(raw["w1"][s_dim:])
            .at[:, H1_PAD:H1_PAD + 200].set(raw["w4"][s_dim:]))
    w2p = jnp.zeros((H1_PAD, H2_PAD), jnp.float32).at[:200, :100].set(raw["w2"])
    w5p = jnp.zeros((H1_PAD, H2_PAD), jnp.float32).at[:200, :100].set(raw["w5"])
    w3p = jnp.zeros((H2_PAD, 2), jnp.float32).at[:100, 0:1].set(raw["w3"])
    w6p = jnp.zeros((H2_PAD, 2), jnp.float32).at[:100, 1:2].set(raw["w6"])

    fused = {
        "cw": cw.astype(jnp.bfloat16),
        "cb": jnp.zeros((1, S_PAD), jnp.float32),
        "w14s": w14s.astype(jnp.bfloat16),
        "w14a": w14a.astype(jnp.bfloat16),
        "b14": jnp.zeros((1, 2 * H1_PAD), jnp.float32),
        "w2": w2p.astype(jnp.bfloat16),
        "b2": jnp.zeros((1, H2_PAD), jnp.float32),
        "w5": w5p.astype(jnp.bfloat16),
        "b5": jnp.zeros((1, H2_PAD), jnp.float32),
        "w3": w3p.astype(jnp.bfloat16),
        "w6": w6p.astype(jnp.bfloat16),
        "b36": jnp.zeros((1, 2), jnp.float32),
    }
    return fused, raw


def critic_forward(params, x, u):
    """Equivalent of Critic.forward(x, u) -> (q1, q2), each (B, 1) f32."""
    B, C, H, W = x.shape
    hw = H * W
    a_dim = u.shape[1]
    # batch tile: shard across grid (and v7x's two cores) when B is large
    tb = B if B <= 8 else (8 if B % 8 == 0 else B)

    patches = im2col_3x3(x).astype(jnp.bfloat16)                 # (B*hw, C*9)
    u_bf = u.astype(jnp.bfloat16)

    def full(shape):
        return pl.BlockSpec(shape, lambda i: (0, 0))

    out = pl.pallas_call(
        functools.partial(critic_fused_kernel, tb=tb, hw=hw),
        out_shape=jax.ShapeDtypeStruct((B, 2), jnp.float32),
        grid_spec=pltpu.PrefetchScalarGridSpec(
            num_scalar_prefetch=0,
            grid=(B // tb,),
            in_specs=[
                pl.BlockSpec((tb * hw, C * 9), lambda i: (i, 0)),   # patches
                pl.BlockSpec((tb, a_dim), lambda i: (i, 0)),        # actions
                full((C * 9, S_PAD)), full((1, S_PAD)),             # conv w, b
                full((S_PAD, 2 * H1_PAD)), full((a_dim, 2 * H1_PAD)),
                full((1, 2 * H1_PAD)),                              # layer-1 combined
                full((H1_PAD, H2_PAD)), full((1, H2_PAD)),          # fc2
                full((H1_PAD, H2_PAD)), full((1, H2_PAD)),          # fc5
                full((H2_PAD, 2)), full((H2_PAD, 2)), full((1, 2)), # fc3/fc6
            ],
            out_specs=pl.BlockSpec((tb, 2), lambda i: (i, 0)),
        ),
        compiler_params=pltpu.CompilerParams(
            dimension_semantics=("parallel",)),
    )(patches, u_bf,
      params["cw"], params["cb"],
      params["w14s"], params["w14a"], params["b14"],
      params["w2"], params["b2"], params["w5"], params["b5"],
      params["w3"], params["w6"], params["b36"])

    return out[:, 0:1], out[:, 1:2]


def critic_reference(raw, x, u):
    """Pure-JAX f32 reference of the PyTorch forward (for a sanity check)."""
    B, C, H, W = x.shape
    y = jnp.maximum(im2col_3x3(x) @ raw["conv_w"], 0.0)          # conv bias = 0
    feats = jnp.mean(y.reshape(B, H * W, -1), axis=1)
    z = jnp.concatenate([feats, u], axis=1)
    h1 = jnp.maximum(z @ raw["w1"], 0.0)
    h1 = jnp.maximum(h1 @ raw["w2"], 0.0)
    q1 = h1 @ raw["w3"]
    h2 = jnp.maximum(z @ raw["w4"], 0.0)
    h2 = jnp.maximum(h2 @ raw["w5"], 0.0)
    q2 = h2 @ raw["w6"]
    return q1, q2


# ----------------------------------------------------------------------------
# Main
# ----------------------------------------------------------------------------

if __name__ == "__main__":
    B, C, H, W = 2, 4, 16, 16     # NCHW image input to the conv feature net
    S_DIM = 8                     # conv feature dim fed to fc1/fc4
    A_DIM = 4                     # action dim

    key = jax.random.PRNGKey(0)
    kp, kx, ku = jax.random.split(key, 3)

    params, raw = init_params(kp, C, S_DIM, A_DIM)
    x = jax.random.normal(kx, (B, C, H, W), jnp.float32)
    u = jax.random.normal(ku, (B, A_DIM), jnp.float32)

    fwd = jax.jit(functools.partial(critic_forward, params))
    q1, q2 = fwd(x, u)
    jax.block_until_ready((q1, q2))

    assert q1.shape == (B, 1) and q2.shape == (B, 1)
    assert q1.dtype == jnp.float32 and q2.dtype == jnp.float32

    # bf16-matmul kernel vs f32 reference (loose tolerance for bf16 operands)
    q1_ref, q2_ref = critic_reference(raw, x, u)
    np.testing.assert_allclose(np.asarray(q1), np.asarray(q1_ref), rtol=1e-1, atol=1e-1)
    np.testing.assert_allclose(np.asarray(q2), np.asarray(q2_ref), rtol=1e-1, atol=1e-1)

    print("KERNEL_OK")
</pallas_src>

<mosaic_0001>
module attributes {stable_mosaic.version = 11 : i64} {
  func.func @critic_fused_kernel(%arg0: i32, %arg1: memref<512x36xbf16, #tpu.memory_space<vmem>>, %arg2: memref<2x4xbf16, #tpu.memory_space<vmem>>, %arg3: memref<36x128xbf16, #tpu.memory_space<vmem>>, %arg4: memref<1x128xf32, #tpu.memory_space<vmem>>, %arg5: memref<128x512xbf16, #tpu.memory_space<vmem>>, %arg6: memref<4x512xbf16, #tpu.memory_space<vmem>>, %arg7: memref<1x512xf32, #tpu.memory_space<vmem>>, %arg8: memref<256x128xbf16, #tpu.memory_space<vmem>>, %arg9: memref<1x128xf32, #tpu.memory_space<vmem>>, %arg10: memref<256x128xbf16, #tpu.memory_space<vmem>>, %arg11: memref<1x128xf32, #tpu.memory_space<vmem>>, %arg12: memref<128x2xbf16, #tpu.memory_space<vmem>>, %arg13: memref<128x2xbf16, #tpu.memory_space<vmem>>, %arg14: memref<1x2xf32, #tpu.memory_space<vmem>>, %arg15: memref<2x2xf32, #tpu.memory_space<vmem>>) attributes {dimension_semantics = [#tpu.dimension_semantics<parallel>], iteration_bounds = array<i64: 1>, scalar_prefetch = 0 : i64, scratch_operands = 0 : i64, tpu.core_type = #tpu.core_type<tc>, window_params = [{transform_indices = @transform_0, window_bounds = array<i64: 512, 36>}, {transform_indices = @transform_1, window_bounds = array<i64: 2, 4>}, {pipeline_mode = #tpu.pipeline_mode<synchronous>, transform_indices = @transform_2, window_bounds = array<i64: 36, 128>}, {pipeline_mode = #tpu.pipeline_mode<synchronous>, transform_indices = @transform_3, window_bounds = array<i64: 1, 128>}, {pipeline_mode = #tpu.pipeline_mode<synchronous>, transform_indices = @transform_4, window_bounds = array<i64: 128, 512>}, {pipeline_mode = #tpu.pipeline_mode<synchronous>, transform_indices = @transform_5, window_bounds = array<i64: 4, 512>}, {pipeline_mode = #tpu.pipeline_mode<synchronous>, transform_indices = @transform_6, window_bounds = array<i64: 1, 512>}, {pipeline_mode = #tpu.pipeline_mode<synchronous>, transform_indices = @transform_7, window_bounds = array<i64: 256, 128>}, {pipeline_mode = #tpu.pipeline_mode<synchronous>, transform_indices = @transform_8, window_bounds = array<i64: 1, 128>}, {pipeline_mode = #tpu.pipeline_mode<synchronous>, transform_indices = @transform_9, window_bounds = array<i64: 256, 128>}, {pipeline_mode = #tpu.pipeline_mode<synchronous>, transform_indices = @transform_10, window_bounds = array<i64: 1, 128>}, {pipeline_mode = #tpu.pipeline_mode<synchronous>, transform_indices = @transform_11, window_bounds = array<i64: 128, 2>}, {pipeline_mode = #tpu.pipeline_mode<synchronous>, transform_indices = @transform_12, window_bounds = array<i64: 128, 2>}, {pipeline_mode = #tpu.pipeline_mode<synchronous>, transform_indices = @transform_13, window_bounds = array<i64: 1, 2>}, {transform_indices = @transform_14, window_bounds = array<i64: 2, 2>}]} {
    %c0 = arith.constant 0 : index
    %c0_0 = arith.constant 0 : index
    %0 = vector.load %arg1[%c0, %c0_0] : memref<512x36xbf16, #tpu.memory_space<vmem>>, vector<512x36xbf16>
    %c0_1 = arith.constant 0 : index
    %c0_2 = arith.constant 0 : index
    %1 = vector.load %arg3[%c0_1, %c0_2] : memref<36x128xbf16, #tpu.memory_space<vmem>>, vector<36x128xbf16>
    %cst = arith.constant dense<0.000000e+00> : vector<512x128xf32>
    %2 = tpu.matmul %0, %1, %cst {dimension_numbers = #tpu.dot_dimension_numbers<[1], [0], [0], [1], [0, 0, 1, 1], [], []>} : vector<512x36xbf16>, vector<36x128xbf16>, vector<512x128xf32> -> vector<512x128xf32>
    %c0_3 = arith.constant 0 : index
    %c0_4 = arith.constant 0 : index
    %3 = vector.load %arg4[%c0_3, %c0_4] : memref<1x128xf32, #tpu.memory_space<vmem>>, vector<1x128xf32>
    %4 = vector.broadcast %3 : vector<1x128xf32> to vector<512x128xf32>
    %5 = arith.addf %2, %4 : vector<512x128xf32>
    %cst_5 = arith.constant 0.000000e+00 : f32
    %6 = vector.broadcast %cst_5 : f32 to vector<512x128xf32>
    %7 = arith.maximumf %5, %6 : vector<512x128xf32>
    %8 = vector.shape_cast %7 : vector<512x128xf32> to vector<2x256x128xf32>
    %cst_6 = arith.constant dense<0.000000e+00> : vector<2x128xf32>
    %9 = vector.multi_reduction <add>, %8, %cst_6 [1] : vector<2x256x128xf32> to vector<2x128xf32>
    %cst_7 = arith.constant 3.906250e-03 : f32
    %10 = vector.broadcast %cst_7 : f32 to vector<2x128xf32>
    %11 = arith.mulf %9, %10 : vector<2x128xf32>
    %12 = arith.truncf %11 : vector<2x128xf32> to vector<2x128xbf16>
    %c0_8 = arith.constant 0 : index
    %c0_9 = arith.constant 0 : index
    %13 = vector.load %arg2[%c0_8, %c0_9] : memref<2x4xbf16, #tpu.memory_space<vmem>>, vector<2x4xbf16>
    %c0_10 = arith.constant 0 : index
    %c0_11 = arith.constant 0 : index
    %14 = vector.load %arg5[%c0_10, %c0_11] : memref<128x512xbf16, #tpu.memory_space<vmem>>, vector<128x512xbf16>
    %cst_12 = arith.constant dense<0.000000e+00> : vector<2x512xf32>
    %15 = tpu.matmul %12, %14, %cst_12 {dimension_numbers = #tpu.dot_dimension_numbers<[1], [0], [0], [1], [0, 0, 1, 1], [], []>} : vector<2x128xbf16>, vector<128x512xbf16>, vector<2x512xf32> -> vector<2x512xf32>
    %c0_13 = arith.constant 0 : index
    %c0_14 = arith.constant 0 : index
    %16 = vector.load %arg6[%c0_13, %c0_14] : memref<4x512xbf16, #tpu.memory_space<vmem>>, vector<4x512xbf16>
    %cst_15 = arith.constant dense<0.000000e+00> : vector<2x512xf32>
    %17 = tpu.matmul %13, %16, %cst_15 {dimension_numbers = #tpu.dot_dimension_numbers<[1], [0], [0], [1], [0, 0, 1, 1], [], []>} : vector<2x4xbf16>, vector<4x512xbf16>, vector<2x512xf32> -> vector<2x512xf32>
    %18 = arith.addf %15, %17 : vector<2x512xf32>
    %c0_16 = arith.constant 0 : index
    %c0_17 = arith.constant 0 : index
    %19 = vector.load %arg7[%c0_16, %c0_17] : memref<1x512xf32, #tpu.memory_space<vmem>>, vector<1x512xf32>
    %20 = vector.broadcast %19 : vector<1x512xf32> to vector<2x512xf32>
    %21 = arith.addf %18, %20 : vector<2x512xf32>
    %cst_18 = arith.constant 0.000000e+00 : f32
    %22 = vector.broadcast %cst_18 : f32 to vector<2x512xf32>
    %23 = arith.maximumf %21, %22 : vector<2x512xf32>
    %24 = vector.extract_strided_slice %23 {offsets = [0, 0], sizes = [2, 256], strides = [1, 1]} : vector<2x512xf32> to vector<2x256xf32>
    %25 = arith.truncf %24 : vector<2x256xf32> to vector<2x256xbf16>
    %26 = vector.extract_strided_slice %23 {offsets = [0, 256], sizes = [2, 256], strides = [1, 1]} : vector<2x512xf32> to vector<2x256xf32>
    %27 = arith.truncf %26 : vector<2x256xf32> to vector<2x256xbf16>
    %c0_19 = arith.constant 0 : index
    %c0_20 = arith.constant 0 : index
    %28 = vector.load %arg8[%c0_19, %c0_20] : memref<256x128xbf16, #tpu.memory_space<vmem>>, vector<256x128xbf16>
    %cst_21 = arith.constant dense<0.000000e+00> : vector<2x128xf32>
    %29 = tpu.matmul %25, %28, %cst_21 {dimension_numbers = #tpu.dot_dimension_numbers<[1], [0], [0], [1], [0, 0, 1, 1], [], []>} : vector<2x256xbf16>, vector<256x128xbf16>, vector<2x128xf32> -> vector<2x128xf32>
    %c0_22 = arith.constant 0 : index
    %c0_23 = arith.constant 0 : index
    %30 = vector.load %arg9[%c0_22, %c0_23] : memref<1x128xf32, #tpu.memory_space<vmem>>, vector<1x128xf32>
    %31 = vector.broadcast %30 : vector<1x128xf32> to vector<2x128xf32>
    %32 = arith.addf %29, %31 : vector<2x128xf32>
    %cst_24 = arith.constant 0.000000e+00 : f32
    %33 = vector.broadcast %cst_24 : f32 to vector<2x128xf32>
    %34 = arith.maximumf %32, %33 : vector<2x128xf32>
    %c0_25 = arith.constant 0 : index
    %c0_26 = arith.constant 0 : index
    %35 = vector.load %arg10[%c0_25, %c0_26] : memref<256x128xbf16, #tpu.memory_space<vmem>>, vector<256x128xbf16>
    %cst_27 = arith.constant dense<0.000000e+00> : vector<2x128xf32>
    %36 = tpu.matmul %27, %35, %cst_27 {dimension_numbers = #tpu.dot_dimension_numbers<[1], [0], [0], [1], [0, 0, 1, 1], [], []>} : vector<2x256xbf16>, vector<256x128xbf16>, vector<2x128xf32> -> vector<2x128xf32>
    %c0_28 = arith.constant 0 : index
    %c0_29 = arith.constant 0 : index
    %37 = vector.load %arg11[%c0_28, %c0_29] : memref<1x128xf32, #tpu.memory_space<vmem>>, vector<1x128xf32>
    %38 = vector.broadcast %37 : vector<1x128xf32> to vector<2x128xf32>
    %39 = arith.addf %36, %38 : vector<2x128xf32>
    %cst_30 = arith.constant 0.000000e+00 : f32
    %40 = vector.broadcast %cst_30 : f32 to vector<2x128xf32>
    %41 = arith.maximumf %39, %40 : vector<2x128xf32>
    %42 = arith.truncf %34 : vector<2x128xf32> to vector<2x128xbf16>
    %c0_31 = arith.constant 0 : index
    %c0_32 = arith.constant 0 : index
    %43 = vector.load %arg12[%c0_31, %c0_32] : memref<128x2xbf16, #tpu.memory_space<vmem>>, vector<128x2xbf16>
    %cst_33 = arith.constant dense<0.000000e+00> : vector<2x2xf32>
    %44 = tpu.matmul %42, %43, %cst_33 {dimension_numbers = #tpu.dot_dimension_numbers<[1], [0], [0], [1], [0, 0, 1, 1], [], []>} : vector<2x128xbf16>, vector<128x2xbf16>, vector<2x2xf32> -> vector<2x2xf32>
    %45 = arith.truncf %41 : vector<2x128xf32> to vector<2x128xbf16>
    %c0_34 = arith.constant 0 : index
    %c0_35 = arith.constant 0 : index
    %46 = vector.load %arg13[%c0_34, %c0_35] : memref<128x2xbf16, #tpu.memory_space<vmem>>, vector<128x2xbf16>
    %cst_36 = arith.constant dense<0.000000e+00> : vector<2x2xf32>
    %47 = tpu.matmul %45, %46, %cst_36 {dimension_numbers = #tpu.dot_dimension_numbers<[1], [0], [0], [1], [0, 0, 1, 1], [], []>} : vector<2x128xbf16>, vector<128x2xbf16>, vector<2x2xf32> -> vector<2x2xf32>
    %48 = arith.addf %44, %47 : vector<2x2xf32>
    %c0_37 = arith.constant 0 : index
    %c0_38 = arith.constant 0 : index
    %49 = vector.load %arg14[%c0_37, %c0_38] : memref<1x2xf32, #tpu.memory_space<vmem>>, vector<1x2xf32>
    %50 = vector.broadcast %49 : vector<1x2xf32> to vector<2x2xf32>
    %51 = arith.addf %48, %50 : vector<2x2xf32>
    %c0_39 = arith.constant 0 : index
    %c0_40 = arith.constant 0 : index
    %52 = vector.load %arg15[%c0_39, %c0_40] : memref<2x2xf32, #tpu.memory_space<vmem>>, vector<2x2xf32>
    tpu.vector_store %arg15[%c0_39, %c0_40], %51 {strides = array<i32>} : memref<2x2xf32, #tpu.memory_space<vmem>>, vector<2x2xf32>,
    return
  }
  func.func @transform_0(%arg0: i32) -> (i32, i32) {
    %c0_i32 = arith.constant 0 : i32
    %c0_i32_0 = arith.constant 0 : i32
    return %arg0, %c0_i32 : i32, i32
  }
  func.func @transform_1(%arg0: i32) -> (i32, i32) {
    %c0_i32 = arith.constant 0 : i32
    %c0_i32_0 = arith.constant 0 : i32
    return %arg0, %c0_i32 : i32, i32
  }
  func.func @transform_2(%arg0: i32) -> (i32, i32) {
    %c0_i32 = arith.constant 0 : i32
    %c0_i32_0 = arith.constant 0 : i32
    %c0_i32_1 = arith.constant 0 : i32
    return %c0_i32, %c0_i32_0 : i32, i32
  }
  func.func @transform_3(%arg0: i32) -> (i32, i32) {
    %c0_i32 = arith.constant 0 : i32
    %c0_i32_0 = arith.constant 0 : i32
    %c0_i32_1 = arith.constant 0 : i32
    return %c0_i32, %c0_i32_0 : i32, i32
  }
  func.func @transform_4(%arg0: i32) -> (i32, i32) {
    %c0_i32 = arith.constant 0 : i32
    %c0_i32_0 = arith.constant 0 : i32
    %c0_i32_1 = arith.constant 0 : i32
    return %c0_i32, %c0_i32_0 : i32, i32
  }
  func.func @transform_5(%arg0: i32) -> (i32, i32) {
    %c0_i32 = arith.constant 0 : i32
    %c0_i32_0 = arith.constant 0 : i32
    %c0_i32_1 = arith.constant 0 : i32
    return %c0_i32, %c0_i32_0 : i32, i32
  }
  func.func @transform_6(%arg0: i32) -> (i32, i32) {
    %c0_i32 = arith.constant 0 : i32
    %c0_i32_0 = arith.constant 0 : i32
    %c0_i32_1 = arith.constant 0 : i32
    return %c0_i32, %c0_i32_0 : i32, i32
  }
  func.func @transform_7(%arg0: i32) -> (i32, i32) {
    %c0_i32 = arith.constant 0 : i32
    %c0_i32_0 = arith.constant 0 : i32
    %c0_i32_1 = arith.constant 0 : i32
    return %c0_i32, %c0_i32_0 : i32, i32
  }
  func.func @transform_8(%arg0: i32) -> (i32, i32) {
    %c0_i32 = arith.constant 0 : i32
    %c0_i32_0 = arith.constant 0 : i32
    %c0_i32_1 = arith.constant 0 : i32
    return %c0_i32, %c0_i32_0 : i32, i32
  }
  func.func @transform_9(%arg0: i32) -> (i32, i32) {
    %c0_i32 = arith.constant 0 : i32
    %c0_i32_0 = arith.constant 0 : i32
    %c0_i32_1 = arith.constant 0 : i32
    return %c0_i32, %c0_i32_0 : i32, i32
  }
  func.func @transform_10(%arg0: i32) -> (i32, i32) {
    %c0_i32 = arith.constant 0 : i32
    %c0_i32_0 = arith.constant 0 : i32
    %c0_i32_1 = arith.constant 0 : i32
    return %c0_i32, %c0_i32_0 : i32, i32
  }
  func.func @transform_11(%arg0: i32) -> (i32, i32) {
    %c0_i32 = arith.constant 0 : i32
    %c0_i32_0 = arith.constant 0 : i32
    %c0_i32_1 = arith.constant 0 : i32
    return %c0_i32, %c0_i32_0 : i32, i32
  }
  func.func @transform_12(%arg0: i32) -> (i32, i32) {
    %c0_i32 = arith.constant 0 : i32
    %c0_i32_0 = arith.constant 0 : i32
    %c0_i32_1 = arith.constant 0 : i32
    return %c0_i32, %c0_i32_0 : i32, i32
  }
  func.func @transform_13(%arg0: i32) -> (i32, i32) {
    %c0_i32 = arith.constant 0 : i32
    %c0_i32_0 = arith.constant 0 : i32
    %c0_i32_1 = arith.constant 0 : i32
    return %c0_i32, %c0_i32_0 : i32, i32
  }
  func.func @transform_14(%arg0: i32) -> (i32, i32) {
    %c0_i32 = arith.constant 0 : i32
    %c0_i32_0 = arith.constant 0 : i32
    return %arg0, %c0_i32 : i32, i32
  }
}

</mosaic_0001>

<llo_original>
// kernel: critic_forward.1
$region0: #{critic_forward.1}
  #allocation0 [shape = 'u32[]', space=smem, size = 0x4, offset = 0x4, fixed_abs, tag = 'smem constant byte address 0x4 - core index']
  #allocation1 [shape = 'u32[144,128]{1,0:T(1,128)}', space=vmem, size = 0x12000, scoped, tag = 'internal scratch']
  %s0 = inlined_call_operand.vmem [shape: bf16[512,36], index: 0, kind: input, shape index: {}]
  %s1 = inlined_call_operand.vmem [shape: bf16[2,4], index: 1, kind: input, shape index: {}]
  %s2 = inlined_call_operand.vmem [shape: bf16[36,128], index: 2, kind: input, shape index: {}]
  %s3 = inlined_call_operand.vmem [shape: f32[1,128], index: 3, kind: input, shape index: {}, may-alias: {3,8,10}]
  %s4 = inlined_call_operand.vmem [shape: bf16[128,512], index: 4, kind: input, shape index: {}]
  %s5 = inlined_call_operand.vmem [shape: bf16[4,512], index: 5, kind: input, shape index: {}]
  %s6 = inlined_call_operand.vmem [shape: f32[1,512], index: 6, kind: input, shape index: {}]
  %s7 = inlined_call_operand.vmem [shape: bf16[256,128], index: 7, kind: input, shape index: {}]
  %s8 = inlined_call_operand.vmem [shape: f32[1,128], index: 8, kind: input, shape index: {}, may-alias: {3,8,10}]
  %s9 = inlined_call_operand.vmem [shape: bf16[256,128], index: 9, kind: input, shape index: {}]
  %s10 = inlined_call_operand.vmem [shape: f32[1,128], index: 10, kind: input, shape index: {}, may-alias: {3,8,10}]
  %s11 = inlined_call_operand.vmem [shape: bf16[128,2], index: 11, kind: input, shape index: {}]
  %s12 = inlined_call_operand.vmem [shape: bf16[128,2], index: 12, kind: input, shape index: {}]
  %s13 = inlined_call_operand.vmem [shape: f32[1,2], index: 13, kind: input, shape index: {}]
  %s14 = inlined_call_operand.vmem [shape: f32[2,2], index: 14, kind: output, shape index: {}]
  %s15 = sld [smem:[#allocation0]]
  $region66: #{critic_forward.1} parent=0
    _
  %s17 = ssub.s32 1, %s15
  %s18 = scalar_select 0, %s17, %s15
  // Predicated region
  $region2: #{critic_forward.1} parent=0 // pred_check
    _
  $region3: #{critic_forward.1} parent=0 // pred_check_branch
    %20 = sbr.rel (0) target = $region5
  $region4: #{critic_forward.1} parent=0 // pred_region
    _
  $region5: #{critic_forward.1} parent=0 // pred_fallthru
    _
  // Predicated region
  $region6: #{critic_forward.1} parent=0 // pred_check
    _
  $region7: #{critic_forward.1} parent=0 // pred_check_branch
    %22 = sbr.rel (0) target = $region9
  $region8: #{critic_forward.1} parent=0 // pred_region
    _
  $region9: #{critic_forward.1} parent=0 // pred_fallthru
    _
  // Predicated region
  $region10: #{critic_forward.1} parent=0 // pred_check
    _
  $region11: #{critic_forward.1} parent=0 // pred_check_branch
    %24 = sbr.rel (0) target = $region13
  $region12: #{critic_forward.1} parent=0 // pred_region
    _
  $region13: #{critic_forward.1} parent=0 // pred_fallthru
    _
  // Predicated region
  $region14: #{critic_forward.1} parent=0 // pred_check
    _
  $region15: #{critic_forward.1} parent=0 // pred_check_branch
    %26 = sbr.rel (0) target = $region17
  $region16: #{critic_forward.1} parent=0 // pred_region
    _
  $region17: #{critic_forward.1} parent=0 // pred_fallthru
    _
  // Predicated region
  $region18: #{critic_forward.1} parent=0 // pred_check
    _
  $region19: #{critic_forward.1} parent=0 // pred_check_branch
    %28 = sbr.rel (0) target = $region21
  $region20: #{critic_forward.1} parent=0 // pred_region
    _
  $region21: #{critic_forward.1} parent=0 // pred_fallthru
    _
  // Predicated region
  $region22: #{critic_forward.1} parent=0 // pred_check
    _
  $region23: #{critic_forward.1} parent=0 // pred_check_branch
    %30 = sbr.rel (0) target = $region25
  $region24: #{critic_forward.1} parent=0 // pred_region
    _
  $region25: #{critic_forward.1} parent=0 // pred_fallthru
    _
  // Predicated region
  $region26: #{critic_forward.1} parent=0 // pred_check
    _
  $region27: #{critic_forward.1} parent=0 // pred_check_branch
    %32 = sbr.rel (0) target = $region29
  $region28: #{critic_forward.1} parent=0 // pred_region
    _
  $region29: #{critic_forward.1} parent=0 // pred_fallthru
    _
  // Predicated region
  $region30: #{critic_forward.1} parent=0 // pred_check
    _
  $region31: #{critic_forward.1} parent=0 // pred_check_branch
    %34 = sbr.rel (0) target = $region33
  $region32: #{critic_forward.1} parent=0 // pred_region
    _
  $region33: #{critic_forward.1} parent=0 // pred_fallthru
    _
  // Predicated region
  $region34: #{critic_forward.1} parent=0 // pred_check
    _
  $region35: #{critic_forward.1} parent=0 // pred_check_branch
    %36 = sbr.rel (0) target = $region37
  $region36: #{critic_forward.1} parent=0 // pred_region
    _
  $region37: #{critic_forward.1} parent=0 // pred_fallthru
    _
  // Predicated region
  $region38: #{critic_forward.1} parent=0 // pred_check
    _
  $region39: #{critic_forward.1} parent=0 // pred_check_branch
    %38 = sbr.rel (0) target = $region41
  $region40: #{critic_forward.1} parent=0 // pred_region
    _
  $region41: #{critic_forward.1} parent=0 // pred_fallthru
    _
  // Predicated region
  $region42: #{critic_forward.1} parent=0 // pred_check
    _
  $region43: #{critic_forward.1} parent=0 // pred_check_branch
    %40 = sbr.rel (0) target = $region45
  $region44: #{critic_forward.1} parent=0 // pred_region
    _
  $region45: #{critic_forward.1} parent=0 // pred_fallthru
    _
  // Predicated region
  $region46: #{critic_forward.1} parent=0 // pred_check
    _
  $region47: #{critic_forward.1} parent=0 // pred_check_branch
    %42 = sbr.rel (0) target = $region49
  $region48: #{critic_forward.1} parent=0 // pred_region
    _
  $region49: #{critic_forward.1} parent=0 // pred_fallthru
    _
  // Predicated region
  $region50: #{critic_forward.1} parent=0 // pred_check
    _
  $region51: #{critic_forward.1} parent=0 // pred_check_branch
    %44 = sbr.rel (0) target = $region53
  $region52: #{critic_forward.1} parent=0 // pred_region
    _
  $region53: #{critic_forward.1} parent=0 // pred_fallthru
    _
  // Predicated region
  $region54: #{critic_forward.1} parent=0 // pred_check
    _
  $region55: #{critic_forward.1} parent=0 // pred_check_branch
    %46 = sbr.rel (0) target = $region57
  $region56: #{critic_forward.1} parent=0 // pred_region
    _
  $region57: #{critic_forward.1} parent=0 // pred_fallthru
    _
  %v48 = vld [vmem:[%s0] sm:$0xf]
  %v49 = vld [vmem:[%s0 + $0x4] sm:$0xf]
  %v50 = vld [vmem:[%s0 + $0x8] sm:$0xf]
  %v51 = vld [vmem:[%s0 + $0xc] sm:$0xf]
  %v52 = vld [vmem:[%s0 + $0x10] sm:$0xf]
  %v53 = vld [vmem:[%s0 + $0x14] sm:$0xf]
  %v54 = vld [vmem:[%s0 + $0x18] sm:$0xf]
  %v55 = vld [vmem:[%s0 + $0x1c] sm:$0xf]
  %v56 = vld [vmem:[%s0 + $0x20] sm:$0xf]
  %v57 = vld [vmem:[%s0 + $0x24] sm:$0xf]
  %v58 = vld [vmem:[%s0 + $0x28] sm:$0xf]
  %v59 = vld [vmem:[%s0 + $0x2c] sm:$0xf]
  %v60 = vld [vmem:[%s0 + $0x30] sm:$0xf]
  %v61 = vld [vmem:[%s0 + $0x34] sm:$0xf]
  %v62 = vld [vmem:[%s0 + $0x38] sm:$0xf]
  %v63 = vld [vmem:[%s0 + $0x3c] sm:$0xf]
  %v64 = vld [vmem:[%s0 + $0x40] sm:$0xf]
  %v65 = vld [vmem:[%s0 + $0x44] sm:$0xf]
  %v66 = vld [vmem:[%s0 + $0x48] sm:$0xf]
  %v67 = vld [vmem:[%s0 + $0x4c] sm:$0xf]
  %v68 = vld [vmem:[%s0 + $0x50] sm:$0xf]
  %v69 = vld [vmem:[%s0 + $0x54] sm:$0xf]
  %v70 = vld [vmem:[%s0 + $0x58] sm:$0xf]
  %v71 = vld [vmem:[%s0 + $0x5c] sm:$0xf]
  %v72 = vld [vmem:[%s0 + $0x60] sm:$0xf]
  %v73 = vld [vmem:[%s0 + $0x64] sm:$0xf]
  %v74 = vld [vmem:[%s0 + $0x68] sm:$0xf]
  %v75 = vld [vmem:[%s0 + $0x6c] sm:$0xf]
  %v76 = vld [vmem:[%s0 + $0x70] sm:$0xf]
  %v77 = vld [vmem:[%s0 + $0x74] sm:$0xf]
  %v78 = vld [vmem:[%s0 + $0x78] sm:$0xf]
  %v79 = vld [vmem:[%s0 + $0x7c] sm:$0xf]
  %v80 = vld [vmem:[%s0 + $0x80] sm:$0xf]
  %v81 = vld [vmem:[%s0 + $0x84] sm:$0xf]
  %v82 = vld [vmem:[%s0 + $0x88] sm:$0xf]
  %v83 = vld [vmem:[%s0 + $0x8c] sm:$0xf]
  %v84 = vld [vmem:[%s0 + $0x90] sm:$0xf]
  %v85 = vld [vmem:[%s0 + $0x94] sm:$0xf]
  %v86 = vld [vmem:[%s0 + $0x98] sm:$0xf]
  %v87 = vld [vmem:[%s0 + $0x9c] sm:$0xf]
  %v88 = vld [vmem:[%s0 + $0xa0] sm:$0xf]
  %v89 = vld [vmem:[%s0 + $0xa4] sm:$0xf]
  %v90 = vld [vmem:[%s0 + $0xa8] sm:$0xf]
  %v91 = vld [vmem:[%s0 + $0xac] sm:$0xf]
  %v92 = vld [vmem:[%s0 + $0xb0] sm:$0xf]
  %v93 = vld [vmem:[%s0 + $0xb4] sm:$0xf]
  %v94 = vld [vmem:[%s0 + $0xb8] sm:$0xf]
  %v95 = vld [vmem:[%s0 + $0xbc] sm:$0xf]
  %v96 = vld [vmem:[%s0 + $0xc0] sm:$0xf]
  %v97 = vld [vmem:[%s0 + $0xc4] sm:$0xf]
  %v98 = vld [vmem:[%s0 + $0xc8] sm:$0xf]
  %v99 = vld [vmem:[%s0 + $0xcc] sm:$0xf]
  %v100 = vld [vmem:[%s0 + $0xd0] sm:$0xf]
  %v101 = vld [vmem:[%s0 + $0xd4] sm:$0xf]
  %v102 = vld [vmem:[%s0 + $0xd8] sm:$0xf]
  %v103 = vld [vmem:[%s0 + $0xdc] sm:$0xf]
  %v104 = vld [vmem:[%s0 + $0xe0] sm:$0xf]
  %v105 = vld [vmem:[%s0 + $0xe4] sm:$0xf]
  %v106 = vld [vmem:[%s0 + $0xe8] sm:$0xf]
  %v107 = vld [vmem:[%s0 + $0xec] sm:$0xf]
  %v108 = vld [vmem:[%s0 + $0xf0] sm:$0xf]
  %v109 = vld [vmem:[%s0 + $0xf4] sm:$0xf]
  %v110 = vld [vmem:[%s0 + $0xf8] sm:$0xf]
  %v111 = vld [vmem:[%s0 + $0xfc] sm:$0xf]
  %v112 = vld [vmem:[%s2] sm:$0xf]
  %v113 = vld [vmem:[%s2 + $0x4] sm:$0xf]
  %v114 = vld [vmem:[%s2 + $0x8] sm:$0xf]
  %v115 = vld [vmem:[%s2 + $0xc] sm:$0xf]
  %v116 = vld [vmem:[%s2 + $0x10] sm:$0x3]
  %v117 = vld [vmem:[%s3] sm:$0x1]
  %v119 = vlaneseq
  %v120 = vshrl.u32 %v119, 7
  %v121 = vsub.s32 0, %v120
  %v122 = vrot.slane %v117, %v121
  %v188 = vunpack.c.l.b16 %v48
  %v189 = vunpack.c.l.b16 %v49
  %v190 = vunpack.c.l.b16 %v50
  %v191 = vunpack.c.l.b16 %v51
  %v192 = vunpack.c.l.b16 %v52
  %v193 = vunpack.c.l.b16 %v53
  %v194 = vunpack.c.l.b16 %v54
  %v195 = vunpack.c.l.b16 %v55
  %v196 = vunpack.c.l.b16 %v56
  %v197 = vunpack.c.l.b16 %v57
  %v198 = vunpack.c.l.b16 %v58
  %v199 = vunpack.c.l.b16 %v59
  %v200 = vunpack.c.l.b16 %v60
  %v201 = vunpack.c.l.b16 %v61
  %v202 = vunpack.c.l.b16 %v62
  %v203 = vunpack.c.l.b16 %v63
  %v204 = vunpack.c.l.b16 %v64
  %v205 = vunpack.c.l.b16 %v65
  %v206 = vunpack.c.l.b16 %v66
  %v207 = vunpack.c.l.b16 %v67
  %v208 = vunpack.c.l.b16 %v68
  %v209 = vunpack.c.l.b16 %v69
  %v210 = vunpack.c.l.b16 %v70
  %v211 = vunpack.c.l.b16 %v71
  %v212 = vunpack.c.l.b16 %v72
  %v213 = vunpack.c.l.b16 %v73
  %v214 = vunpack.c.l.b16 %v74
  %v215 = vunpack.c.l.b16 %v75
  %v216 = vunpack.c.l.b16 %v76
  %v217 = vunpack.c.l.b16 %v77
  %v218 = vunpack.c.l.b16 %v78
  %v219 = vunpack.c.l.b16 %v79
  %v220 = vunpack.c.l.b16 %v80
  %v221 = vunpack.c.l.b16 %v81
  %v222 = vunpack.c.l.b16 %v82
  %v223 = vunpack.c.l.b16 %v83
  %v224 = vunpack.c.l.b16 %v84
  %v225 = vunpack.c.l.b16 %v85
  %v226 = vunpack.c.l.b16 %v86
  %v227 = vunpack.c.l.b16 %v87
  %v228 = vunpack.c.l.b16 %v88
  %v229 = vunpack.c.l.b16 %v89
  %v230 = vunpack.c.l.b16 %v90
  %v231 = vunpack.c.l.b16 %v91
  %v232 = vunpack.c.l.b16 %v92
  %v233 = vunpack.c.l.b16 %v93
  %v234 = vunpack.c.l.b16 %v94
  %v235 = vunpack.c.l.b16 %v95
  %v236 = vunpack.c.l.b16 %v96
  %v237 = vunpack.c.l.b16 %v97
  %v238 = vunpack.c.l.b16 %v98
  %v239 = vunpack.c.l.b16 %v99
  %v240 = vunpack.c.l.b16 %v100
  %v241 = vunpack.c.l.b16 %v101
  %v242 = vunpack.c.l.b16 %v102
  %v243 = vunpack.c.l.b16 %v103
  %v244 = vunpack.c.l.b16 %v104
  %v245 = vunpack.c.l.b16 %v105
  %v246 = vunpack.c.l.b16 %v106
  %v247 = vunpack.c.l.b16 %v107
  %v248 = vunpack.c.l.b16 %v108
  %v249 = vunpack.c.l.b16 %v109
  %v250 = vunpack.c.l.b16 %v110
  %v251 = vunpack.c.l.b16 %v111
  %v252 = vpack.c.b16 %v189, %v188
  %v253 = vpack.c.b16 %v191, %v190
  %v254 = vpack.c.b16 %v193, %v192
  %v255 = vpack.c.b16 %v195, %v194
  %v256 = vpack.c.b16 %v197, %v196
  %v257 = vpack.c.b16 %v199, %v198
  %v258 = vpack.c.b16 %v201, %v200
  %v259 = vpack.c.b16 %v203, %v202
  %v260 = vpack.c.b16 %v205, %v204
  %v261 = vpack.c.b16 %v207, %v206
  %v262 = vpack.c.b16 %v209, %v208
  %v263 = vpack.c.b16 %v211, %v210
  %v264 = vpack.c.b16 %v213, %v212
  %v265 = vpack.c.b16 %v215, %v214
  %v266 = vpack.c.b16 %v217, %v216
  %v267 = vpack.c.b16 %v219, %v218
  %v268 = vpack.c.b16 %v221, %v220
  %v269 = vpack.c.b16 %v223, %v222
  %v270 = vpack.c.b16 %v225, %v224
  %v271 = vpack.c.b16 %v227, %v226
  %v272 = vpack.c.b16 %v229, %v228
  %v273 = vpack.c.b16 %v231, %v230
  %v274 = vpack.c.b16 %v233, %v232
  %v275 = vpack.c.b16 %v235, %v234
  %v276 = vpack.c.b16 %v237, %v236
  %v277 = vpack.c.b16 %v239, %v238
  %v278 = vpack.c.b16 %v241, %v240
  %v279 = vpack.c.b16 %v243, %v242
  %v280 = vpack.c.b16 %v245, %v244
  %v281 = vpack.c.b16 %v247, %v246
  %v282 = vpack.c.b16 %v249, %v248
  %v283 = vpack.c.b16 %v251, %v250
  %v289 = vunpack.c.l.b16 %v112
  %v290 = vunpack.c.l.b16 %v113
  %v291 = vunpack.c.l.b16 %v114
  %v292 = vunpack.c.l.b16 %v115
  %v293 = vunpack.c.l.b16 %v116
  %v294 = vpack.c.b16 %v290, %v289
  %v295 = vpack.c.b16 %v292, %v291
  %v296 = vpack.c.b16 %v293, %v293
  %vm299 = vcmask 293888
  %v301 = vsel %vm299, %v252, 0
  %v304 = vsel %vm299, %v253, 0
  %v307 = vsel %vm299, %v254, 0
  %v310 = vsel %vm299, %v255, 0
  %v313 = vsel %vm299, %v256, 0
  %v316 = vsel %vm299, %v257, 0
  %v319 = vsel %vm299, %v258, 0
  %v322 = vsel %vm299, %v259, 0
  %v325 = vsel %vm299, %v260, 0
  %v328 = vsel %vm299, %v261, 0
  %v331 = vsel %vm299, %v262, 0
  %v334 = vsel %vm299, %v263, 0
  %v337 = vsel %vm299, %v264, 0
  %v340 = vsel %vm299, %v265, 0
  %v343 = vsel %vm299, %v266, 0
  %v346 = vsel %vm299, %v267, 0
  %v349 = vsel %vm299, %v268, 0
  %v352 = vsel %vm299, %v269, 0
  %v355 = vsel %vm299, %v270, 0
  %v358 = vsel %vm299, %v271, 0
  %v361 = vsel %vm299, %v272, 0
  %v364 = vsel %vm299, %v273, 0
  %v367 = vsel %vm299, %v274, 0
  %v370 = vsel %vm299, %v275, 0
  %v373 = vsel %vm299, %v276, 0
  %v376 = vsel %vm299, %v277, 0
  %v379 = vsel %vm299, %v278, 0
  %v382 = vsel %vm299, %v279, 0
  %v385 = vsel %vm299, %v280, 0
  %v388 = vsel %vm299, %v281, 0
  %v391 = vsel %vm299, %v282, 0
  %v394 = vsel %vm299, %v283, 0
  %vm396 = vcmask 1041408
  %v398 = vsel %vm396, %v296, 0
  %400 = vmatprep.subr.bf16.mxu0 0
  %401 = vmatpush1.bf16.msra.mxu0 0
  %402 = vmatprep.subr.bf16.mxu0 0
  %403 = vmatpush1.bf16.msra.mxu0 0
  %404 = vmatprep.subr.bf16.mxu0 0
  %405 = vmatpush1.bf16.msra.mxu0 0
  %406 = vmatprep.subr.bf16.mxu0 0
  %407 = vmatpush1.bf16.msra.mxu0 0
  %408 = vmatprep.subr.bf16.mxu0 0
  %409 = vmatpush1.bf16.msra.mxu0 0
  %410 = vmatprep.subr.bf16.mxu0 0
  %411 = vmatpush1.bf16.msra.mxu0 %v398
  %412 = vmatprep.subr.bf16.mxu0 0
  %413 = vmatpush1.bf16.msra.mxu0 %v295
  %414 = vmatprep.subr.bf16.mxu0 0
  %415 = vmatpush1.bf16.msra.mxu0 %v294
  %416 = vmatprep.subr.bf16.mxu0 0
  %417 = vmatpush2.bf16.msra.mxu0 0
  %418 = vmatprep.subr.bf16.mxu0 0
  %419 = vmatpush2.bf16.msra.mxu0 0
  %420 = vmatprep.subr.bf16.mxu0 0
  %421 = vmatpush2.bf16.msra.mxu0 0
  %422 = vmatprep.subr.bf16.mxu0 0
  %423 = vmatpush2.bf16.msra.mxu0 0
  %424 = vmatprep.subr.bf16.mxu0 0
  %425 = vmatpush2.bf16.msra.mxu0 0
  %426 = vmatprep.subr.bf16.mxu0 0
  %427 = vmatpush2.bf16.msra.mxu0 0
  %428 = vmatprep.subr.bf16.mxu0 0
  %429 = vmatpush2.bf16.msra.mxu0 0
  %430 = vmatprep.subr.bf16.mxu0 0
  %431 = vmatpush2.bf16.msra.mxu0 0
  %432 = vmatprep.mubr.bf16.mxu0 0
  %433 = vmatmul.mubr.bf16.gmra.mxu0 %v301
  %v434 = vpop.f32.mrf.mxu0
  %v435 = vadd.f32 %v122, %v434
  %v436 = vpop.f32.mrf.mxu0
  %v437 = vpop.f32.mrf.mxu0
  %v438 = vadd.f32 %v122, %v437
  %v439 = vpop.f32.mrf.mxu0
  %440 = vmatprep.mubr.bf16.mxu0 0
  %441 = vmatmul.mubr.bf16.gmra.mxu0 %v304
  %v442 = vpop.f32.mrf.mxu0
  %v443 = vadd.f32 %v122, %v442
  %v444 = vpop.f32.mrf.mxu0
  %v445 = vpop.f32.mrf.mxu0
  %v446 = vadd.f32 %v122, %v445
  %v447 = vpop.f32.mrf.mxu0
  %448 = vmatprep.mubr.bf16.mxu0 0
  %449 = vmatmul.mubr.bf16.gmra.mxu0 %v307
  %v450 = vpop.f32.mrf.mxu0
  %v451 = vadd.f32 %v122, %v450
  %v452 = vpop.f32.mrf.mxu0
  %v453 = vpop.f32.mrf.mxu0
  %v454 = vadd.f32 %v122, %v453
  %v455 = vpop.f32.mrf.mxu0
  %456 = vmatprep.mubr.bf16.mxu0 0
  %457 = vmatmul.mubr.bf16.gmra.mxu0 %v310
  %v458 = vpop.f32.mrf.mxu0
  %v459 = vadd.f32 %v122, %v458
  %v460 = vpop.f32.mrf.mxu0
  %v461 = vpop.f32.mrf.mxu0
  %v462 = vadd.f32 %v122, %v461
  %v463 = vpop.f32.mrf.mxu0
  %464 = vmatprep.mubr.bf16.mxu0 0
  %465 = vmatmul.mubr.bf16.gmra.mxu0 %v313
  %v466 = vpop.f32.mrf.mxu0
  %v467 = vadd.f32 %v122, %v466
  %v468 = vpop.f32.mrf.mxu0
  %v469 = vpop.f32.mrf.mxu0
  %v470 = vadd.f32 %v122, %v469
  %v471 = vpop.f32.mrf.mxu0
  %472 = vmatprep.mubr.bf16.mxu0 0
  %473 = vmatmul.mubr.bf16.gmra.mxu0 %v316
  %v474 = vpop.f32.mrf.mxu0
  %v475 = vadd.f32 %v122, %v474
  %v476 = vpop.f32.mrf.mxu0
  %v477 = vpop.f32.mrf.mxu0
  %v478 = vadd.f32 %v122, %v477
  %v479 = vpop.f32.mrf.mxu0
  %480 = vmatprep.mubr.bf16.mxu0 0
  %481 = vmatmul.mubr.bf16.gmra.mxu0 %v319
  %v482 = vpop.f32.mrf.mxu0
  %v483 = vadd.f32 %v122, %v482
  %v484 = vpop.f32.mrf.mxu0
  %v485 = vpop.f32.mrf.mxu0
  %v486 = vadd.f32 %v122, %v485
  %v487 = vpop.f32.mrf.mxu0
  %488 = vmatprep.mubr.bf16.mxu0 0
  %489 = vmatmul.mubr.bf16.gmra.mxu0 %v322
  %v490 = vpop.f32.mrf.mxu0
  %v491 = vadd.f32 %v122, %v490
  %v492 = vpop.f32.mrf.mxu0
  %v493 = vpop.f32.mrf.mxu0
  %v494 = vadd.f32 %v122, %v493
  %v495 = vpop.f32.mrf.mxu0
  %496 = vmatprep.mubr.bf16.mxu0 0
  %497 = vmatmul.mubr.bf16.gmra.mxu0 %v325
  %v498 = vpop.f32.mrf.mxu0
  %v499 = vadd.f32 %v122, %v498
  %v500 = vpop.f32.mrf.mxu0
  %v501 = vpop.f32.mrf.mxu0
  %v502 = vadd.f32 %v122, %v501
  %v503 = vpop.f32.mrf.mxu0
  %504 = vmatprep.mubr.bf16.mxu0 0
  %505 = vmatmul.mubr.bf16.gmra.mxu0 %v328
  %v506 = vpop.f32.mrf.mxu0
  %v507 = vadd.f32 %v122, %v506
  %v508 = vpop.f32.mrf.mxu0
  %v509 = vpop.f32.mrf.mxu0
  %v510 = vadd.f32 %v122, %v509
  %v511 = vpop.f32.mrf.mxu0
  %512 = vmatprep.mubr.bf16.mxu0 0
  %513 = vmatmul.mubr.bf16.gmra.mxu0 %v331
  %v514 = vpop.f32.mrf.mxu0
  %v515 = vadd.f32 %v122, %v514
  %v516 = vpop.f32.mrf.mxu0
  %v517 = vpop.f32.mrf.mxu0
  %v518 = vadd.f32 %v122, %v517
  %v519 = vpop.f32.mrf.mxu0
  %520 = vmatprep.mubr.bf16.mxu0 0
  %521 = vmatmul.mubr.bf16.gmra.mxu0 %v334
  %v522 = vpop.f32.mrf.mxu0
  %v523 = vadd.f32 %v122, %v522
  %v524 = vpop.f32.mrf.mxu0
  %v525 = vpop.f32.mrf.mxu0
  %v526 = vadd.f32 %v122, %v525
  %v527 = vpop.f32.mrf.mxu0
  %528 = vmatprep.mubr.bf16.mxu0 0
  %529 = vmatmul.mubr.bf16.gmra.mxu0 %v337
  %v530 = vpop.f32.mrf.mxu0
  %v531 = vadd.f32 %v122, %v530
  %v532 = vpop.f32.mrf.mxu0
  %v533 = vpop.f32.mrf.mxu0
  %v534 = vadd.f32 %v122, %v533
  %v535 = vpop.f32.mrf.mxu0
  %536 = vmatprep.mubr.bf16.mxu0 0
  %537 = vmatmul.mubr.bf16.gmra.mxu0 %v340
  %v538 = vpop.f32.mrf.mxu0
  %v539 = vadd.f32 %v122, %v538
  %v540 = vpop.f32.mrf.mxu0
  %v541 = vpop.f32.mrf.mxu0
  %v542 = vadd.f32 %v122, %v541
  %v543 = vpop.f32.mrf.mxu0
  %544 = vmatprep.mubr.bf16.mxu0 0
  %545 = vmatmul.mubr.bf16.gmra.mxu0 %v343
  %v546 = vpop.f32.mrf.mxu0
  %v547 = vadd.f32 %v122, %v546
  %v548 = vpop.f32.mrf.mxu0
  %v549 = vpop.f32.mrf.mxu0
  %v550 = vadd.f32 %v122, %v549
  %v551 = vpop.f32.mrf.mxu0
  %552 = vmatprep.mubr.bf16.mxu0 0
  %553 = vmatmul.mubr.bf16.gmra.mxu0 %v346
  %v554 = vpop.f32.mrf.mxu0
  %v555 = vadd.f32 %v122, %v554
  %v556 = vpop.f32.mrf.mxu0
  %v557 = vpop.f32.mrf.mxu0
  %v558 = vadd.f32 %v122, %v557
  %v559 = vpop.f32.mrf.mxu0
  %560 = vmatprep.mubr.bf16.mxu0 0
  %561 = vmatmul.mubr.bf16.gmra.mxu0 %v349
  %v562 = vpop.f32.mrf.mxu0
  %v563 = vadd.f32 %v122, %v562
  %v564 = vpop.f32.mrf.mxu0
  %v565 = vpop.f32.mrf.mxu0
  %v566 = vadd.f32 %v122, %v565
  %v567 = vpop.f32.mrf.mxu0
  %568 = vmatprep.mubr.bf16.mxu0 0
  %569 = vmatmul.mubr.bf16.gmra.mxu0 %v352
  %v570 = vpop.f32.mrf.mxu0
  %v571 = vadd.f32 %v122, %v570
  %v572 = vpop.f32.mrf.mxu0
  %v573 = vpop.f32.mrf.mxu0
  %v574 = vadd.f32 %v122, %v573
  %v575 = vpop.f32.mrf.mxu0
  %576 = vmatprep.mubr.bf16.mxu0 0
  %577 = vmatmul.mubr.bf16.gmra.mxu0 %v355
  %v578 = vpop.f32.mrf.mxu0
  %v579 = vadd.f32 %v122, %v578
  %v580 = vpop.f32.mrf.mxu0
  %v581 = vpop.f32.mrf.mxu0
  %v582 = vadd.f32 %v122, %v581
  %v583 = vpop.f32.mrf.mxu0
  %584 = vmatprep.mubr.bf16.mxu0 0
  %585 = vmatmul.mubr.bf16.gmra.mxu0 %v358
  %v586 = vpop.f32.mrf.mxu0
  %v587 = vadd.f32 %v122, %v586
  %v588 = vpop.f32.mrf.mxu0
  %v589 = vpop.f32.mrf.mxu0
  %v590 = vadd.f32 %v122, %v589
  %v591 = vpop.f32.mrf.mxu0
  %592 = vmatprep.mubr.bf16.mxu0 0
  %593 = vmatmul.mubr.bf16.gmra.mxu0 %v361
  %v594 = vpop.f32.mrf.mxu0
  %v595 = vadd.f32 %v122, %v594
  %v596 = vpop.f32.mrf.mxu0
  %v597 = vpop.f32.mrf.mxu0
  %v598 = vadd.f32 %v122, %v597
  %v599 = vpop.f32.mrf.mxu0
  %600 = vmatprep.mubr.bf16.mxu0 0
  %601 = vmatmul.mubr.bf16.gmra.mxu0 %v364
  %v602 = vpop.f32.mrf.mxu0
  %v603 = vadd.f32 %v122, %v602
  %v604 = vpop.f32.mrf.mxu0
  %v605 = vpop.f32.mrf.mxu0
  %v606 = vadd.f32 %v122, %v605
  %v607 = vpop.f32.mrf.mxu0
  %608 = vmatprep.mubr.bf16.mxu0 0
  %609 = vmatmul.mubr.bf16.gmra.mxu0 %v367
  %v610 = vpop.f32.mrf.mxu0
  %v611 = vadd.f32 %v122, %v610
  %v612 = vpop.f32.mrf.mxu0
  %v613 = vpop.f32.mrf.mxu0
  %v614 = vadd.f32 %v122, %v613
  %v615 = vpop.f32.mrf.mxu0
  %616 = vmatprep.mubr.bf16.mxu0 0
  %617 = vmatmul.mubr.bf16.gmra.mxu0 %v370
  %v618 = vpop.f32.mrf.mxu0
  %v619 = vadd.f32 %v122, %v618
  %v620 = vpop.f32.mrf.mxu0
  %v621 = vpop.f32.mrf.mxu0
  %v622 = vadd.f32 %v122, %v621
  %v623 = vpop.f32.mrf.mxu0
  %624 = vmatprep.mubr.bf16.mxu0 0
  %625 = vmatmul.mubr.bf16.gmra.mxu0 %v373
  %v626 = vpop.f32.mrf.mxu0
  %v627 = vadd.f32 %v122, %v626
  %v628 = vpop.f32.mrf.mxu0
  %v629 = vpop.f32.mrf.mxu0
  %v630 = vadd.f32 %v122, %v629
  %v631 = vpop.f32.mrf.mxu0
  %632 = vmatprep.mubr.bf16.mxu0 0
  %633 = vmatmul.mubr.bf16.gmra.mxu0 %v376
  %v634 = vpop.f32.mrf.mxu0
  %v635 = vadd.f32 %v122, %v634
  %v636 = vpop.f32.mrf.mxu0
  %v637 = vpop.f32.mrf.mxu0
  %v638 = vadd.f32 %v122, %v637
  %v639 = vpop.f32.mrf.mxu0
  %640 = vmatprep.mubr.bf16.mxu0 0
  %641 = vmatmul.mubr.bf16.gmra.mxu0 %v379
  %v642 = vpop.f32.mrf.mxu0
  %v643 = vadd.f32 %v122, %v642
  %v644 = vpop.f32.mrf.mxu0
  %v645 = vpop.f32.mrf.mxu0
  %v646 = vadd.f32 %v122, %v645
  %v647 = vpop.f32.mrf.mxu0
  %648 = vmatprep.mubr.bf16.mxu0 0
  %649 = vmatmul.mubr.bf16.gmra.mxu0 %v382
  %v650 = vpop.f32.mrf.mxu0
  %v651 = vadd.f32 %v122, %v650
  %v652 = vpop.f32.mrf.mxu0
  %v653 = vpop.f32.mrf.mxu0
  %v654 = vadd.f32 %v122, %v653
  %v655 = vpop.f32.mrf.mxu0
  %656 = vmatprep.mubr.bf16.mxu0 0
  %657 = vmatmul.mubr.bf16.gmra.mxu0 %v385
  %v658 = vpop.f32.mrf.mxu0
  %v659 = vadd.f32 %v122, %v658
  %v660 = vpop.f32.mrf.mxu0
  %v661 = vpop.f32.mrf.mxu0
  %v662 = vadd.f32 %v122, %v661
  %v663 = vpop.f32.mrf.mxu0
  %664 = vmatprep.mubr.bf16.mxu0 0
  %665 = vmatmul.mubr.bf16.gmra.mxu0 %v388
  %v666 = vpop.f32.mrf.mxu0
  %v667 = vadd.f32 %v122, %v666
  %v668 = vpop.f32.mrf.mxu0
  %v669 = vpop.f32.mrf.mxu0
  %v670 = vadd.f32 %v122, %v669
  %v671 = vpop.f32.mrf.mxu0
  %672 = vmatprep.mubr.bf16.mxu0 0
  %673 = vmatmul.mubr.bf16.gmra.mxu0 %v391
  %v674 = vpop.f32.mrf.mxu0
  %v675 = vadd.f32 %v122, %v674
  %v676 = vpop.f32.mrf.mxu0
  %v677 = vpop.f32.mrf.mxu0
  %v678 = vadd.f32 %v122, %v677
  %v679 = vpop.f32.mrf.mxu0
  %680 = vmatprep.mubr.bf16.mxu0 0
  %681 = vmatmul.mubr.bf16.gmra.mxu0 %v394
  %v682 = vpop.f32.mrf.mxu0
  %v683 = vadd.f32 %v122, %v682
  %v684 = vpop.f32.mrf.mxu0
  %v685 = vpop.f32.mrf.mxu0
  %v686 = vadd.f32 %v122, %v685
  %v687 = vpop.f32.mrf.mxu0
  %688 = vdwg.mxu0
  %v689 = vmax.f32 %v435, 0.0
  %v690 = vmax.f32 %v438, 0.0
  %v691 = vmax.f32 %v443, 0.0
  %v692 = vmax.f32 %v446, 0.0
  %v693 = vmax.f32 %v451, 0.0
  %v694 = vmax.f32 %v454, 0.0
  %v695 = vmax.f32 %v459, 0.0
  %v696 = vmax.f32 %v462, 0.0
  %v697 = vmax.f32 %v467, 0.0
  %v698 = vmax.f32 %v470, 0.0
  %v699 = vmax.f32 %v475, 0.0
  %v700 = vmax.f32 %v478, 0.0
  %v701 = vmax.f32 %v483, 0.0
  %v702 = vmax.f32 %v486, 0.0
  %v703 = vmax.f32 %v491, 0.0
  %v704 = vmax.f32 %v494, 0.0
  %v705 = vmax.f32 %v499, 0.0
  %v706 = vmax.f32 %v502, 0.0
  %v707 = vmax.f32 %v507, 0.0
  %v708 = vmax.f32 %v510, 0.0
  %v709 = vmax.f32 %v515, 0.0
  %v710 = vmax.f32 %v518, 0.0
  %v711 = vmax.f32 %v523, 0.0
  %v712 = vmax.f32 %v526, 0.0
  %v713 = vmax.f32 %v531, 0.0
  %v714 = vmax.f32 %v534, 0.0
  %v715 = vmax.f32 %v539, 0.0
  %v716 = vmax.f32 %v542, 0.0
  %v717 = vmax.f32 %v547, 0.0
  %v718 = vmax.f32 %v550, 0.0
  %v719 = vmax.f32 %v555, 0.0
  %v720 = vmax.f32 %v558, 0.0
  %v721 = vmax.f32 %v563, 0.0
  %v722 = vmax.f32 %v566, 0.0
  %v723 = vmax.f32 %v571, 0.0
  %v724 = vmax.f32 %v574, 0.0
  %v725 = vmax.f32 %v579, 0.0
  %v726 = vmax.f32 %v582, 0.0
  %v727 = vmax.f32 %v587, 0.0
  %v728 = vmax.f32 %v590, 0.0
  %v729 = vmax.f32 %v595, 0.0
  %v730 = vmax.f32 %v598, 0.0
  %v731 = vmax.f32 %v603, 0.0
  %v732 = vmax.f32 %v606, 0.0
  %v733 = vmax.f32 %v611, 0.0
  %v734 = vmax.f32 %v614, 0.0
  %v735 = vmax.f32 %v619, 0.0
  %v736 = vmax.f32 %v622, 0.0
  %v737 = vmax.f32 %v627, 0.0
  %v738 = vmax.f32 %v630, 0.0
  %v739 = vmax.f32 %v635, 0.0
  %v740 = vmax.f32 %v638, 0.0
  %v741 = vmax.f32 %v643, 0.0
  %v742 = vmax.f32 %v646, 0.0
  %v743 = vmax.f32 %v651, 0.0
  %v744 = vmax.f32 %v654, 0.0
  %v745 = vmax.f32 %v659, 0.0
  %v746 = vmax.f32 %v662, 0.0
  %v747 = vmax.f32 %v667, 0.0
  %v748 = vmax.f32 %v670, 0.0
  %v749 = vmax.f32 %v675, 0.0
  %v750 = vmax.f32 %v678, 0.0
  %v751 = vmax.f32 %v683, 0.0
  %v752 = vmax.f32 %v686, 0.0
  %v753 = vadd.f32 %v689, %v690
  %v754 = vadd.f32 %v753, %v691
  %v755 = vadd.f32 %v754, %v692
  %v756 = vadd.f32 %v755, %v693
  %v757 = vadd.f32 %v756, %v694
  %v758 = vadd.f32 %v757, %v695
  %v759 = vadd.f32 %v758, %v696
  %v760 = vadd.f32 %v759, %v697
  %v761 = vadd.f32 %v760, %v698
  %v762 = vadd.f32 %v761, %v699
  %v763 = vadd.f32 %v762, %v700
  %v764 = vadd.f32 %v763, %v701
  %v765 = vadd.f32 %v764, %v702
  %v766 = vadd.f32 %v765, %v703
  %v767 = vadd.f32 %v766, %v704
  %v768 = vadd.f32 %v767, %v705
  %v769 = vadd.f32 %v768, %v706
  %v770 = vadd.f32 %v769, %v707
  %v771 = vadd.f32 %v770, %v708
  %v772 = vadd.f32 %v771, %v709
  %v773 = vadd.f32 %v772, %v710
  %v774 = vadd.f32 %v773, %v711
  %v775 = vadd.f32 %v774, %v712
  %v776 = vadd.f32 %v775, %v713
  %v777 = vadd.f32 %v776, %v714
  %v778 = vadd.f32 %v777, %v715
  %v779 = vadd.f32 %v778, %v716
  %v780 = vadd.f32 %v779, %v717
  %v781 = vadd.f32 %v780, %v718
  %v782 = vadd.f32 %v781, %v719
  %v783 = vadd.f32 %v782, %v720
  %v784 = vrot.slane %v783, 4
  %v785 = vadd.f32 %v783, %v784
  %v786 = vrot.slane %v785, 2
  %v787 = vadd.f32 %v785, %v786
  %v788 = vrot.slane %v787, 1
  %v789 = vadd.f32 %v787, %v788
  %v790 = vadd.f32 %v721, %v722
  %v791 = vadd.f32 %v790, %v723
  %v792 = vadd.f32 %v791, %v724
  %v793 = vadd.f32 %v792, %v725
  %v794 = vadd.f32 %v793, %v726
  %v795 = vadd.f32 %v794, %v727
  %v796 = vadd.f32 %v795, %v728
  %v797 = vadd.f32 %v796, %v729
  %v798 = vadd.f32 %v797, %v730
  %v799 = vadd.f32 %v798, %v731
  %v800 = vadd.f32 %v799, %v732
  %v801 = vadd.f32 %v800, %v733
  %v802 = vadd.f32 %v801, %v734
  %v803 = vadd.f32 %v802, %v735
  %v804 = vadd.f32 %v803, %v736
  %v805 = vadd.f32 %v804, %v737
  %v806 = vadd.f32 %v805, %v738
  %v807 = vadd.f32 %v806, %v739
  %v808 = vadd.f32 %v807, %v740
  %v809 = vadd.f32 %v808, %v741
  %v810 = vadd.f32 %v809, %v742
  %v811 = vadd.f32 %v810, %v743
  %v812 = vadd.f32 %v811, %v744
  %v813 = vadd.f32 %v812, %v745
  %v814 = vadd.f32 %v813, %v746
  %v815 = vadd.f32 %v814, %v747
  %v816 = vadd.f32 %v815, %v748
  %v817 = vadd.f32 %v816, %v749
  %v818 = vadd.f32 %v817, %v750
  %v819 = vadd.f32 %v818, %v751
  %v820 = vadd.f32 %v819, %v752
  %v821 = vrot.slane %v820, 4
  %v822 = vadd.f32 %v820, %v821
  %v823 = vrot.slane %v822, 2
  %v824 = vadd.f32 %v822, %v823
  %v825 = vrot.slane %v824, 1
  %v826 = vadd.f32 %v824, %v825
  %v827 = vmul.f32 %v789, 0.00390625
  %v828 = vmul.f32 %v826, 0.00390625
  %v829 = vpack.c.bf16 %v827, %v827
  %v830 = vpack.c.bf16 %v828, %v828
  %v831 = vld [vmem:[%s1] sm:$0x1]
  %v832 = vld [vmem:[%s4] sm:$0xff]
  %v833 = vld [vmem:[%s4 + $0x8] sm:$0xff]
  %v834 = vld [vmem:[%s4 + $0x10] sm:$0xff]
  %v835 = vld [vmem:[%s4 + $0x18] sm:$0xff]
  %v836 = vld [vmem:[%s4 + $0x20] sm:$0xff]
  %v837 = vld [vmem:[%s4 + $0x28] sm:$0xff]
  %v838 = vld [vmem:[%s4 + $0x30] sm:$0xff]
  %v839 = vld [vmem:[%s4 + $0x38] sm:$0xff]
  %v840 = vld [vmem:[%s4 + $0x40] sm:$0xff]
  %v841 = vld [vmem:[%s4 + $0x48] sm:$0xff]
  %v842 = vld [vmem:[%s4 + $0x50] sm:$0xff]
  %v843 = vld [vmem:[%s4 + $0x58] sm:$0xff]
  %v844 = vld [vmem:[%s4 + $0x60] sm:$0xff]
  %v845 = vld [vmem:[%s4 + $0x68] sm:$0xff]
  %v846 = vld [vmem:[%s4 + $0x70] sm:$0xff]
  %v847 = vld [vmem:[%s4 + $0x78] sm:$0xff]
  %v848 = vld [vmem:[%s4 + $0x80] sm:$0xff]
  %v849 = vld [vmem:[%s4 + $0x88] sm:$0xff]
  %v850 = vld [vmem:[%s4 + $0x90] sm:$0xff]
  %v851 = vld [vmem:[%s4 + $0x98] sm:$0xff]
  %v852 = vld [vmem:[%s4 + $0xa0] sm:$0xff]
  %v853 = vld [vmem:[%s4 + $0xa8] sm:$0xff]
  %v854 = vld [vmem:[%s4 + $0xb0] sm:$0xff]
  %v855 = vld [vmem:[%s4 + $0xb8] sm:$0xff]
  %v856 = vld [vmem:[%s4 + $0xc0] sm:$0xff]
  %v857 = vld [vmem:[%s4 + $0xc8] sm:$0xff]
  %v858 = vld [vmem:[%s4 + $0xd0] sm:$0xff]
  %v859 = vld [vmem:[%s4 + $0xd8] sm:$0xff]
  %v860 = vld [vmem:[%s4 + $0xe0] sm:$0xff]
  %v861 = vld [vmem:[%s4 + $0xe8] sm:$0xff]
  %v862 = vld [vmem:[%s4 + $0xf0] sm:$0xff]
  %v863 = vld [vmem:[%s4 + $0xf8] sm:$0xff]
  %v864 = vld [vmem:[%s5] sm:$0xff]
  %v866 = vcombine.high %v864, %v864
  %v868 = vunpack.c.l.s4 1983009808
  %v869 = vunpack.c.0.s8 %v868
  %v870 = vlaneseq
  %v871 = vshrl.u32 %v870, 7
  %v872 = vsub.s32 %v869, %v871
  %v873 = vrot.slane %v864, %v872
  %v875 = vunpack.c.l.s4 1983009808
  %v876 = vunpack.c.0.s8 %v875
  %v877 = vlaneseq
  %v878 = vshrl.u32 %v877, 7
  %v879 = vsub.s32 %v876, %v878
  %v880 = vrot.slane %v866, %v879
  %v881 = vcombine.high %v873, %v873
  %v882 = vcombine.high %v880, %v880
  %vm883 = vcmask 31744
  %v885 = vsel %vm883, %v831, 0
  %v888 = vsel %vm396, %v873, 0
  %v891 = vsel %vm396, %v881, 0
  %v894 = vsel %vm396, %v880, 0
  %v897 = vsel %vm396, %v882, 0
  %899 = vmatprep.subr.bf16.mxu0 0
  %900 = vmatpush1.bf16.msra.mxu0 0
  %901 = vmatprep.subr.bf16.mxu0 0
  %902 = vmatpush1.bf16.msra.mxu0 0
  %903 = vmatprep.subr.bf16.mxu0 0
  %904 = vmatpush1.bf16.msra.mxu0 0
  %905 = vmatprep.subr.bf16.mxu0 0
  %906 = vmatpush1.bf16.msra.mxu0 0
  %907 = vmatprep.subr.bf16.mxu0 0
  %908 = vmatpush1.bf16.msra.mxu0 0
  %909 = vmatprep.subr.bf16.mxu0 0
  %910 = vmatpush1.bf16.msra.mxu0 0
  %911 = vmatprep.subr.bf16.mxu0 0
  %912 = vmatpush1.bf16.msra.mxu0 0
  %913 = vmatprep.subr.bf16.mxu0 %v891
  %914 = vmatpush1.bf16.msra.mxu0 %v888
  %915 = vmatprep.subr.bf16.mxu0 0
  %916 = vmatpush2.bf16.msra.mxu0 0
  %917 = vmatprep.subr.bf16.mxu0 0
  %918 = vmatpush2.bf16.msra.mxu0 0
  %919 = vmatprep.subr.bf16.mxu0 0
  %920 = vmatpush2.bf16.msra.mxu0 0
  %921 = vmatprep.subr.bf16.mxu0 0
  %922 = vmatpush2.bf16.msra.mxu0 0
  %923 = vmatprep.subr.bf16.mxu0 0
  %924 = vmatpush2.bf16.msra.mxu0 0
  %925 = vmatprep.subr.bf16.mxu0 0
  %926 = vmatpush2.bf16.msra.mxu0 0
  %927 = vmatprep.subr.bf16.mxu0 0
  %928 = vmatpush2.bf16.msra.mxu0 0
  %929 = vmatprep.subr.bf16.mxu0 0
  %930 = vmatpush2.bf16.msra.mxu0 0
  %931 = vmatprep.mubr.bf16.mxu0 0
  %932 = vmatmul.mubr.bf16.gmra.mxu0 %v885
  %v933 = vpop.f32.mrf.mxu0
  %v934 = vadd.f32 0.0, %v933
  %v935 = vpop.f32.mrf.mxu0
  %v936 = vadd.f32 0.0, %v935
  %v937 = vpop.f32.mrf.mxu0
  %v938 = vpop.f32.mrf.mxu0
  %939 = vdwg.mxu0
  %940 = vmatprep.subr.bf16.mxu0 0
  %941 = vmatpush1.bf16.msra.mxu0 0
  %942 = vmatprep.subr.bf16.mxu0 0
  %943 = vmatpush1.bf16.msra.mxu0 0
  %944 = vmatprep.subr.bf16.mxu0 0
  %945 = vmatpush1.bf16.msra.mxu0 0
  %946 = vmatprep.subr.bf16.mxu0 0
  %947 = vmatpush1.bf16.msra.mxu0 0
  %948 = vmatprep.subr.bf16.mxu0 0
  %949 = vmatpush1.bf16.msra.mxu0 0
  %950 = vmatprep.subr.bf16.mxu0 0
  %951 = vmatpush1.bf16.msra.mxu0 0
  %952 = vmatprep.subr.bf16.mxu0 0
  %953 = vmatpush1.bf16.msra.mxu0 0
  %954 = vmatprep.subr.bf16.mxu0 %v897
  %955 = vmatpush1.bf16.msra.mxu0 %v894
  %956 = vmatprep.subr.bf16.mxu0 0
  %957 = vmatpush2.bf16.msra.mxu0 0
  %958 = vmatprep.subr.bf16.mxu0 0
  %959 = vmatpush2.bf16.msra.mxu0 0
  %960 = vmatprep.subr.bf16.mxu0 0
  %961 = vmatpush2.bf16.msra.mxu0 0
  %962 = vmatprep.subr.bf16.mxu0 0
  %963 = vmatpush2.bf16.msra.mxu0 0
  %964 = vmatprep.subr.bf16.mxu0 0
  %965 = vmatpush2.bf16.msra.mxu0 0
  %966 = vmatprep.subr.bf16.mxu0 0
  %967 = vmatpush2.bf16.msra.mxu0 0
  %968 = vmatprep.subr.bf16.mxu0 0
  %969 = vmatpush2.bf16.msra.mxu0 0
  %970 = vmatprep.subr.bf16.mxu0 0
  %971 = vmatpush2.bf16.msra.mxu0 0
  %972 = vmatprep.mubr.bf16.mxu0 0
  %973 = vmatmul.mubr.bf16.gmra.mxu0 %v885
  %v974 = vpop.f32.mrf.mxu0
  %v975 = vadd.f32 0.0, %v974
  %v976 = vpop.f32.mrf.mxu0
  %v977 = vadd.f32 0.0, %v976
  %v978 = vpop.f32.mrf.mxu0
  %v979 = vpop.f32.mrf.mxu0
  %980 = vdwg.mxu0
  %v983 = vunpack.c.l.b16 %v829
  %v984 = vunpack.c.l.b16 %v830
  %vm985 = vcmask 1041409
  %v986 = vsel %vm985, %v984, %v983
  %v987 = vpack.c.b16 %v986, %v986
  %v1021 = vunpack.c.l.b16 %v832
  %v1022 = vunpack.c.h.b16 %v832
  %v1023 = vunpack.c.l.b16 %v833
  %v1024 = vunpack.c.h.b16 %v833
  %v1025 = vunpack.c.l.b16 %v834
  %v1026 = vunpack.c.h.b16 %v834
  %v1027 = vunpack.c.l.b16 %v835
  %v1028 = vunpack.c.h.b16 %v835
  %v1029 = vunpack.c.l.b16 %v836
  %v1030 = vunpack.c.h.b16 %v836
  %v1031 = vunpack.c.l.b16 %v837
  %v1032 = vunpack.c.h.b16 %v837
  %v1033 = vunpack.c.l.b16 %v838
  %v1034 = vunpack.c.h.b16 %v838
  %v1035 = vunpack.c.l.b16 %v839
  %v1036 = vunpack.c.h.b16 %v839
  %v1037 = vunpack.c.l.b16 %v840
  %v1038 = vunpack.c.h.b16 %v840
  %v1039 = vunpack.c.l.b16 %v841
  %v1040 = vunpack.c.h.b16 %v841
  %v1041 = vunpack.c.l.b16 %v842
  %v1042 = vunpack.c.h.b16 %v842
  %v1043 = vunpack.c.l.b16 %v843
  %v1044 = vunpack.c.h.b16 %v843
  %v1045 = vunpack.c.l.b16 %v844
  %v1046 = vunpack.c.h.b16 %v844
  %v1047 = vunpack.c.l.b16 %v845
  %v1048 = vunpack.c.h.b16 %v845
  %v1049 = vunpack.c.l.b16 %v846
  %v1050 = vunpack.c.h.b16 %v846
  %v1051 = vunpack.c.l.b16 %v847
  %v1052 = vunpack.c.h.b16 %v847
  %v1053 = vunpack.c.l.b16 %v848
  %v1054 = vunpack.c.h.b16 %v848
  %v1055 = vunpack.c.l.b16 %v849
  %v1056 = vunpack.c.h.b16 %v849
  %v1057 = vunpack.c.l.b16 %v850
  %v1058 = vunpack.c.h.b16 %v850
  %v1059 = vunpack.c.l.b16 %v851
  %v1060 = vunpack.c.h.b16 %v851
  %v1061 = vunpack.c.l.b16 %v852
  %v1062 = vunpack.c.h.b16 %v852
  %v1063 = vunpack.c.l.b16 %v853
  %v1064 = vunpack.c.h.b16 %v853
  %v1065 = vunpack.c.l.b16 %v854
  %v1066 = vunpack.c.h.b16 %v854
  %v1067 = vunpack.c.l.b16 %v855
  %v1068 = vunpack.c.h.b16 %v855
  %v1069 = vunpack.c.l.b16 %v856
  %v1070 = vunpack.c.h.b16 %v856
  %v1071 = vunpack.c.l.b16 %v857
  %v1072 = vunpack.c.h.b16 %v857
  %v1073 = vunpack.c.l.b16 %v858
  %v1074 = vunpack.c.h.b16 %v858
  %v1075 = vunpack.c.l.b16 %v859
  %v1076 = vunpack.c.h.b16 %v859
  %v1077 = vunpack.c.l.b16 %v860
  %v1078 = vunpack.c.h.b16 %v860
  %v1079 = vunpack.c.l.b16 %v861
  %v1080 = vunpack.c.h.b16 %v861
  %v1081 = vunpack.c.l.b16 %v862
  %v1082 = vunpack.c.h.b16 %v862
  %v1083 = vunpack.c.l.b16 %v863
  %v1084 = vunpack.c.h.b16 %v863
  %v1085 = vpack.c.b16 %v1025, %v1021
  %v1086 = vpack.c.b16 %v1026, %v1022
  %v1087 = vpack.c.b16 %v1027, %v1023
  %v1088 = vpack.c.b16 %v1028, %v1024
  %v1089 = vpack.c.b16 %v1033, %v1029
  %v1090 = vpack.c.b16 %v1034, %v1030
  %v1091 = vpack.c.b16 %v1035, %v1031
  %v1092 = vpack.c.b16 %v1036, %v1032
  %v1093 = vpack.c.b16 %v1041, %v1037
  %v1094 = vpack.c.b16 %v1042, %v1038
  %v1095 = vpack.c.b16 %v1043, %v1039
  %v1096 = vpack.c.b16 %v1044, %v1040
  %v1097 = vpack.c.b16 %v1049, %v1045
  %v1098 = vpack.c.b16 %v1050, %v1046
  %v1099 = vpack.c.b16 %v1051, %v1047
  %v1100 = vpack.c.b16 %v1052, %v1048
  %v1101 = vpack.c.b16 %v1057, %v1053
  %v1102 = vpack.c.b16 %v1058, %v1054
  %v1103 = vpack.c.b16 %v1059, %v1055
  %v1104 = vpack.c.b16 %v1060, %v1056
  %v1105 = vpack.c.b16 %v1065, %v1061
  %v1106 = vpack.c.b16 %v1066, %v1062
  %v1107 = vpack.c.b16 %v1067, %v1063
  %v1108 = vpack.c.b16 %v1068, %v1064
  %v1109 = vpack.c.b16 %v1073, %v1069
  %v1110 = vpack.c.b16 %v1074, %v1070
  %v1111 = vpack.c.b16 %v1075, %v1071
  %v1112 = vpack.c.b16 %v1076, %v1072
  %v1113 = vpack.c.b16 %v1081, %v1077
  %v1114 = vpack.c.b16 %v1082, %v1078
  %v1115 = vpack.c.b16 %v1083, %v1079
  %v1116 = vpack.c.b16 %v1084, %v1080
  %1149 = vmatprep.subr.bf16.mxu0 %v1114
  %1150 = vmatpush1.bf16.msra.mxu0 %v1113
  %1151 = vmatprep.subr.bf16.mxu0 %v1110
  %1152 = vmatpush1.bf16.msra.mxu0 %v1109
  %1153 = vmatprep.subr.bf16.mxu0 %v1106
  %1154 = vmatpush1.bf16.msra.mxu0 %v1105
  %1155 = vmatprep.subr.bf16.mxu0 %v1102
  %1156 = vmatpush1.bf16.msra.mxu0 %v1101
  %1157 = vmatprep.subr.bf16.mxu0 %v1098
  %1158 = vmatpush1.bf16.msra.mxu0 %v1097
  %1159 = vmatprep.subr.bf16.mxu0 %v1094
  %1160 = vmatpush1.bf16.msra.mxu0 %v1093
  %1161 = vmatprep.subr.bf16.mxu0 %v1090
  %1162 = vmatpush1.bf16.msra.mxu0 %v1089
  %1163 = vmatprep.subr.bf16.mxu0 %v1086
  %1164 = vmatpush1.bf16.msra.mxu0 %v1085
  %1165 = vmatprep.subr.bf16.mxu0 0
  %1166 = vmatpush2.bf16.msra.mxu0 0
  %1167 = vmatprep.subr.bf16.mxu0 0
  %1168 = vmatpush2.bf16.msra.mxu0 0
  %1169 = vmatprep.subr.bf16.mxu0 0
  %1170 = vmatpush2.bf16.msra.mxu0 0
  %1171 = vmatprep.subr.bf16.mxu0 0
  %1172 = vmatpush2.bf16.msra.mxu0 0
  %1173 = vmatprep.subr.bf16.mxu0 0
  %1174 = vmatpush2.bf16.msra.mxu0 0
  %1175 = vmatprep.subr.bf16.mxu0 0
  %1176 = vmatpush2.bf16.msra.mxu0 0
  %1177 = vmatprep.subr.bf16.mxu0 0
  %1178 = vmatpush2.bf16.msra.mxu0 0
  %1179 = vmatprep.subr.bf16.mxu0 0
  %1180 = vmatpush2.bf16.msra.mxu0 0
  %1181 = vmatprep.mubr.bf16.mxu0 0
  %1182 = vmatmul.mubr.bf16.gmra.mxu0 %v987
  %v1183 = vpop.f32.mrf.mxu0
  %v1184 = vadd.f32 %v934, %v1183
  %v1185 = vpop.f32.mrf.mxu0
  %v1186 = vadd.f32 %v936, %v1185
  %v1187 = vpop.f32.mrf.mxu0
  %v1188 = vpop.f32.mrf.mxu0
  %1189 = vdwg.mxu0
  %1190 = vmatprep.subr.bf16.mxu0 %v1116
  %1191 = vmatpush1.bf16.msra.mxu0 %v1115
  %1192 = vmatprep.subr.bf16.mxu0 %v1112
  %1193 = vmatpush1.bf16.msra.mxu0 %v1111
  %1194 = vmatprep.subr.bf16.mxu0 %v1108
  %1195 = vmatpush1.bf16.msra.mxu0 %v1107
  %1196 = vmatprep.subr.bf16.mxu0 %v1104
  %1197 = vmatpush1.bf16.msra.mxu0 %v1103
  %1198 = vmatprep.subr.bf16.mxu0 %v1100
  %1199 = vmatpush1.bf16.msra.mxu0 %v1099
  %1200 = vmatprep.subr.bf16.mxu0 %v1096
  %1201 = vmatpush1.bf16.msra.mxu0 %v1095
  %1202 = vmatprep.subr.bf16.mxu0 %v1092
  %1203 = vmatpush1.bf16.msra.mxu0 %v1091
  %1204 = vmatprep.subr.bf16.mxu0 %v1088
  %1205 = vmatpush1.bf16.msra.mxu0 %v1087
  %1206 = vmatprep.subr.bf16.mxu0 0
  %1207 = vmatpush2.bf16.msra.mxu0 0
  %1208 = vmatprep.subr.bf16.mxu0 0
  %1209 = vmatpush2.bf16.msra.mxu0 0
  %1210 = vmatprep.subr.bf16.mxu0 0
  %1211 = vmatpush2.bf16.msra.mxu0 0
  %1212 = vmatprep.subr.bf16.mxu0 0
  %1213 = vmatpush2.bf16.msra.mxu0 0
  %1214 = vmatprep.subr.bf16.mxu0 0
  %1215 = vmatpush2.bf16.msra.mxu0 0
  %1216 = vmatprep.subr.bf16.mxu0 0
  %1217 = vmatpush2.bf16.msra.mxu0 0
  %1218 = vmatprep.subr.bf16.mxu0 0
  %1219 = vmatpush2.bf16.msra.mxu0 0
  %1220 = vmatprep.subr.bf16.mxu0 0
  %1221 = vmatpush2.bf16.msra.mxu0 0
  %1222 = vmatprep.mubr.bf16.mxu0 0
  %1223 = vmatmul.mubr.bf16.gmra.mxu0 %v987
  %v1224 = vpop.f32.mrf.mxu0
  %v1225 = vadd.f32 %v975, %v1224
  %v1226 = vpop.f32.mrf.mxu0
  %v1227 = vadd.f32 %v977, %v1226
  %v1228 = vpop.f32.mrf.mxu0
  %v1229 = vpop.f32.mrf.mxu0
  %1230 = vdwg.mxu0
  %v1231 = vld [vmem:[%s6] sm:$0xf]
  %v1233 = vlaneseq
  %v1234 = vshrl.u32 %v1233, 7
  %v1235 = vsub.s32 0, %v1234
  %v1236 = vrot.slane %v1231, %v1235
  %v1237 = vlaneseq
  %v1238 = vshrl.u32 %v1237, 7
  %v1239 = vsub.s32 1, %v1238
  %v1240 = vrot.slane %v1231, %v1239
  %v1241 = vlaneseq
  %v1242 = vshrl.u32 %v1241, 7
  %v1243 = vsub.s32 2, %v1242
  %v1244 = vrot.slane %v1231, %v1243
  %v1245 = vlaneseq
  %v1246 = vshrl.u32 %v1245, 7
  %v1247 = vsub.s32 3, %v1246
  %v1248 = vrot.slane %v1231, %v1247
  %v1253 = vadd.f32 %v1184, %v1236
  %v1254 = vadd.f32 %v1186, %v1240
  %v1255 = vadd.f32 %v1225, %v1244
  %v1256 = vadd.f32 %v1227, %v1248
  %v1257 = vmax.f32 %v1253, 0.0
  %v1258 = vmax.f32 %v1254, 0.0
  %v1259 = vmax.f32 %v1255, 0.0
  %v1260 = vmax.f32 %v1256, 0.0
  %v1261 = vpack.c.bf16 %v1257, %v1257
  %v1262 = vpack.c.bf16 %v1258, %v1258
  %v1263 = vpack.c.bf16 %v1259, %v1259
  %v1264 = vpack.c.bf16 %v1260, %v1260
  %v1265 = vld [vmem:[%s7] sm:$0xf]
  %v1266 = vld [vmem:[%s7 + $0x4] sm:$0xf]
  %v1267 = vld [vmem:[%s7 + $0x8] sm:$0xf]
  %v1268 = vld [vmem:[%s7 + $0xc] sm:$0xf]
  %v1269 = vld [vmem:[%s7 + $0x10] sm:$0xf]
  %v1270 = vld [vmem:[%s7 + $0x14] sm:$0xf]
  %v1271 = vld [vmem:[%s7 + $0x18] sm:$0xf]
  %v1272 = vld [vmem:[%s7 + $0x1c] sm:$0xf]
  %v1273 = vld [vmem:[%s7 + $0x20] sm:$0xf]
  %v1274 = vld [vmem:[%s7 + $0x24] sm:$0xf]
  %v1275 = vld [vmem:[%s7 + $0x28] sm:$0xf]
  %v1276 = vld [vmem:[%s7 + $0x2c] sm:$0xf]
  %v1277 = vld [vmem:[%s7 + $0x30] sm:$0xf]
  %v1278 = vld [vmem:[%s7 + $0x34] sm:$0xf]
  %v1279 = vld [vmem:[%s7 + $0x38] sm:$0xf]
  %v1280 = vld [vmem:[%s7 + $0x3c] sm:$0xf]
  %v1281 = vld [vmem:[%s7 + $0x40] sm:$0xf]
  %v1282 = vld [vmem:[%s7 + $0x44] sm:$0xf]
  %v1283 = vld [vmem:[%s7 + $0x48] sm:$0xf]
  %v1284 = vld [vmem:[%s7 + $0x4c] sm:$0xf]
  %v1285 = vld [vmem:[%s7 + $0x50] sm:$0xf]
  %v1286 = vld [vmem:[%s7 + $0x54] sm:$0xf]
  %v1287 = vld [vmem:[%s7 + $0x58] sm:$0xf]
  %v1288 = vld [vmem:[%s7 + $0x5c] sm:$0xf]
  %v1289 = vld [vmem:[%s7 + $0x60] sm:$0xf]
  %v1290 = vld [vmem:[%s7 + $0x64] sm:$0xf]
  %v1291 = vld [vmem:[%s7 + $0x68] sm:$0xf]
  %v1292 = vld [vmem:[%s7 + $0x6c] sm:$0xf]
  %v1293 = vld [vmem:[%s7 + $0x70] sm:$0xf]
  %v1294 = vld [vmem:[%s7 + $0x74] sm:$0xf]
  %v1295 = vld [vmem:[%s7 + $0x78] sm:$0xf]
  %v1296 = vld [vmem:[%s7 + $0x7c] sm:$0xf]
  %v1297 = vld [vmem:[%s8] sm:$0x1]
  %v1299 = vlaneseq
  %v1300 = vshrl.u32 %v1299, 7
  %v1301 = vsub.s32 0, %v1300
  %v1302 = vrot.slane %v1297, %v1301
  %v1336 = vunpack.c.l.b16 %v1265
  %v1337 = vunpack.c.l.b16 %v1266
  %v1338 = vunpack.c.l.b16 %v1267
  %v1339 = vunpack.c.l.b16 %v1268
  %v1340 = vunpack.c.l.b16 %v1269
  %v1341 = vunpack.c.l.b16 %v1270
  %v1342 = vunpack.c.l.b16 %v1271
  %v1343 = vunpack.c.l.b16 %v1272
  %v1344 = vunpack.c.l.b16 %v1273
  %v1345 = vunpack.c.l.b16 %v1274
  %v1346 = vunpack.c.l.b16 %v1275
  %v1347 = vunpack.c.l.b16 %v1276
  %v1348 = vunpack.c.l.b16 %v1277
  %v1349 = vunpack.c.l.b16 %v1278
  %v1350 = vunpack.c.l.b16 %v1279
  %v1351 = vunpack.c.l.b16 %v1280
  %v1352 = vunpack.c.l.b16 %v1281
  %v1353 = vunpack.c.l.b16 %v1282
  %v1354 = vunpack.c.l.b16 %v1283
  %v1355 = vunpack.c.l.b16 %v1284
  %v1356 = vunpack.c.l.b16 %v1285
  %v1357 = vunpack.c.l.b16 %v1286
  %v1358 = vunpack.c.l.b16 %v1287
  %v1359 = vunpack.c.l.b16 %v1288
  %v1360 = vunpack.c.l.b16 %v1289
  %v1361 = vunpack.c.l.b16 %v1290
  %v1362 = vunpack.c.l.b16 %v1291
  %v1363 = vunpack.c.l.b16 %v1292
  %v1364 = vunpack.c.l.b16 %v1293
  %v1365 = vunpack.c.l.b16 %v1294
  %v1366 = vunpack.c.l.b16 %v1295
  %v1367 = vunpack.c.l.b16 %v1296
  %v1368 = vpack.c.b16 %v1337, %v1336
  %v1369 = vpack.c.b16 %v1339, %v1338
  %v1370 = vpack.c.b16 %v1341, %v1340
  %v1371 = vpack.c.b16 %v1343, %v1342
  %v1372 = vpack.c.b16 %v1345, %v1344
  %v1373 = vpack.c.b16 %v1347, %v1346
  %v1374 = vpack.c.b16 %v1349, %v1348
  %v1375 = vpack.c.b16 %v1351, %v1350
  %v1376 = vpack.c.b16 %v1353, %v1352
  %v1377 = vpack.c.b16 %v1355, %v1354
  %v1378 = vpack.c.b16 %v1357, %v1356
  %v1379 = vpack.c.b16 %v1359, %v1358
  %v1380 = vpack.c.b16 %v1361, %v1360
  %v1381 = vpack.c.b16 %v1363, %v1362
  %v1382 = vpack.c.b16 %v1365, %v1364
  %v1383 = vpack.c.b16 %v1367, %v1366
  %1400 = vmatprep.subr.bf16.mxu0 0
  %1401 = vmatpush1.bf16.msra.mxu0 %v1375
  %1402 = vmatprep.subr.bf16.mxu0 0
  %1403 = vmatpush1.bf16.msra.mxu0 %v1374
  %1404 = vmatprep.subr.bf16.mxu0 0
  %1405 = vmatpush1.bf16.msra.mxu0 %v1373
  %1406 = vmatprep.subr.bf16.mxu0 0
  %1407 = vmatpush1.bf16.msra.mxu0 %v1372
  %1408 = vmatprep.subr.bf16.mxu0 0
  %1409 = vmatpush1.bf16.msra.mxu0 %v1371
  %1410 = vmatprep.subr.bf16.mxu0 0
  %1411 = vmatpush1.bf16.msra.mxu0 %v1370
  %1412 = vmatprep.subr.bf16.mxu0 0
  %1413 = vmatpush1.bf16.msra.mxu0 %v1369
  %1414 = vmatprep.subr.bf16.mxu0 0
  %1415 = vmatpush1.bf16.msra.mxu0 %v1368
  %1416 = vmatprep.subr.bf16.mxu0 0
  %1417 = vmatpush2.bf16.msra.mxu0 %v1383
  %1418 = vmatprep.subr.bf16.mxu0 0
  %1419 = vmatpush2.bf16.msra.mxu0 %v1382
  %1420 = vmatprep.subr.bf16.mxu0 0
  %1421 = vmatpush2.bf16.msra.mxu0 %v1381
  %1422 = vmatprep.subr.bf16.mxu0 0
  %1423 = vmatpush2.bf16.msra.mxu0 %v1380
  %1424 = vmatprep.subr.bf16.mxu0 0
  %1425 = vmatpush2.bf16.msra.mxu0 %v1379
  %1426 = vmatprep.subr.bf16.mxu0 0
  %1427 = vmatpush2.bf16.msra.mxu0 %v1378
  %1428 = vmatprep.subr.bf16.mxu0 0
  %1429 = vmatpush2.bf16.msra.mxu0 %v1377
  %1430 = vmatprep.subr.bf16.mxu0 0
  %1431 = vmatpush2.bf16.msra.mxu0 %v1376
  %1432 = vmatprep.mubr.bf16.mxu0 %v1262
  %1433 = vmatmul.mubr.bf16.gmra.mxu0 %v1261
  %v1434 = vpop.f32.mrf.mxu0
  %v1435 = vadd.f32 %v1302, %v1434
  %v1436 = vpop.f32.mrf.mxu0
  %v1437 = vpop.f32.mrf.mxu0
  %v1438 = vpop.f32.mrf.mxu0
  %1439 = vdwg.mxu0
  %v1440 = vmax.f32 %v1435, 0.0
  %v1441 = vld [vmem:[%s9] sm:$0xf]
  %v1442 = vld [vmem:[%s9 + $0x4] sm:$0xf]
  %v1443 = vld [vmem:[%s9 + $0x8] sm:$0xf]
  %v1444 = vld [vmem:[%s9 + $0xc] sm:$0xf]
  %v1445 = vld [vmem:[%s9 + $0x10] sm:$0xf]
  %v1446 = vld [vmem:[%s9 + $0x14] sm:$0xf]
  %v1447 = vld [vmem:[%s9 + $0x18] sm:$0xf]
  %v1448 = vld [vmem:[%s9 + $0x1c] sm:$0xf]
  %v1449 = vld [vmem:[%s9 + $0x20] sm:$0xf]
  %v1450 = vld [vmem:[%s9 + $0x24] sm:$0xf]
  %v1451 = vld [vmem:[%s9 + $0x28] sm:$0xf]
  %v1452 = vld [vmem:[%s9 + $0x2c] sm:$0xf]
  %v1453 = vld [vmem:[%s9 + $0x30] sm:$0xf]
  %v1454 = vld [vmem:[%s9 + $0x34] sm:$0xf]
  %v1455 = vld [vmem:[%s9 + $0x38] sm:$0xf]
  %v1456 = vld [vmem:[%s9 + $0x3c] sm:$0xf]
  %v1457 = vld [vmem:[%s9 + $0x40] sm:$0xf]
  %v1458 = vld [vmem:[%s9 + $0x44] sm:$0xf]
  %v1459 = vld [vmem:[%s9 + $0x48] sm:$0xf]
  %v1460 = vld [vmem:[%s9 + $0x4c] sm:$0xf]
  %v1461 = vld [vmem:[%s9 + $0x50] sm:$0xf]
  %v1462 = vld [vmem:[%s9 + $0x54] sm:$0xf]
  %v1463 = vld [vmem:[%s9 + $0x58] sm:$0xf]
  %v1464 = vld [vmem:[%s9 + $0x5c] sm:$0xf]
  %v1465 = vld [vmem:[%s9 + $0x60] sm:$0xf]
  %v1466 = vld [vmem:[%s9 + $0x64] sm:$0xf]
  %v1467 = vld [vmem:[%s9 + $0x68] sm:$0xf]
  %v1468 = vld [vmem:[%s9 + $0x6c] sm:$0xf]
  %v1469 = vld [vmem:[%s9 + $0x70] sm:$0xf]
  %v1470 = vld [vmem:[%s9 + $0x74] sm:$0xf]
  %v1471 = vld [vmem:[%s9 + $0x78] sm:$0xf]
  %v1472 = vld [vmem:[%s9 + $0x7c] sm:$0xf]
  %v1473 = vld [vmem:[%s10] sm:$0x1]
  %v1475 = vlaneseq
  %v1476 = vshrl.u32 %v1475, 7
  %v1477 = vsub.s32 0, %v1476
  %v1478 = vrot.slane %v1473, %v1477
  %v1512 = vunpack.c.l.b16 %v1441
  %v1513 = vunpack.c.l.b16 %v1442
  %v1514 = vunpack.c.l.b16 %v1443
  %v1515 = vunpack.c.l.b16 %v1444
  %v1516 = vunpack.c.l.b16 %v1445
  %v1517 = vunpack.c.l.b16 %v1446
  %v1518 = vunpack.c.l.b16 %v1447
  %v1519 = vunpack.c.l.b16 %v1448
  %v1520 = vunpack.c.l.b16 %v1449
  %v1521 = vunpack.c.l.b16 %v1450
  %v1522 = vunpack.c.l.b16 %v1451
  %v1523 = vunpack.c.l.b16 %v1452
  %v1524 = vunpack.c.l.b16 %v1453
  %v1525 = vunpack.c.l.b16 %v1454
  %v1526 = vunpack.c.l.b16 %v1455
  %v1527 = vunpack.c.l.b16 %v1456
  %v1528 = vunpack.c.l.b16 %v1457
  %v1529 = vunpack.c.l.b16 %v1458
  %v1530 = vunpack.c.l.b16 %v1459
  %v1531 = vunpack.c.l.b16 %v1460
  %v1532 = vunpack.c.l.b16 %v1461
  %v1533 = vunpack.c.l.b16 %v1462
  %v1534 = vunpack.c.l.b16 %v1463
  %v1535 = vunpack.c.l.b16 %v1464
  %v1536 = vunpack.c.l.b16 %v1465
  %v1537 = vunpack.c.l.b16 %v1466
  %v1538 = vunpack.c.l.b16 %v1467
  %v1539 = vunpack.c.l.b16 %v1468
  %v1540 = vunpack.c.l.b16 %v1469
  %v1541 = vunpack.c.l.b16 %v1470
  %v1542 = vunpack.c.l.b16 %v1471
  %v1543 = vunpack.c.l.b16 %v1472
  %v1544 = vpack.c.b16 %v1513, %v1512
  %v1545 = vpack.c.b16 %v1515, %v1514
  %v1546 = vpack.c.b16 %v1517, %v1516
  %v1547 = vpack.c.b16 %v1519, %v1518
  %v1548 = vpack.c.b16 %v1521, %v1520
  %v1549 = vpack.c.b16 %v1523, %v1522
  %v1550 = vpack.c.b16 %v1525, %v1524
  %v1551 = vpack.c.b16 %v1527, %v1526
  %v1552 = vpack.c.b16 %v1529, %v1528
  %v1553 = vpack.c.b16 %v1531, %v1530
  %v1554 = vpack.c.b16 %v1533, %v1532
  %v1555 = vpack.c.b16 %v1535, %v1534
  %v1556 = vpack.c.b16 %v1537, %v1536
  %v1557 = vpack.c.b16 %v1539, %v1538
  %v1558 = vpack.c.b16 %v1541, %v1540
  %v1559 = vpack.c.b16 %v1543, %v1542
  %1576 = vmatprep.subr.bf16.mxu0 0
  %1577 = vmatpush1.bf16.msra.mxu0 %v1551
  %1578 = vmatprep.subr.bf16.mxu0 0
  %1579 = vmatpush1.bf16.msra.mxu0 %v1550
  %1580 = vmatprep.subr.bf16.mxu0 0
  %1581 = vmatpush1.bf16.msra.mxu0 %v1549
  %1582 = vmatprep.subr.bf16.mxu0 0
  %1583 = vmatpush1.bf16.msra.mxu0 %v1548
  %1584 = vmatprep.subr.bf16.mxu0 0
  %1585 = vmatpush1.bf16.msra.mxu0 %v1547
  %1586 = vmatprep.subr.bf16.mxu0 0
  %1587 = vmatpush1.bf16.msra.mxu0 %v1546
  %1588 = vmatprep.subr.bf16.mxu0 0
  %1589 = vmatpush1.bf16.msra.mxu0 %v1545
  %1590 = vmatprep.subr.bf16.mxu0 0
  %1591 = vmatpush1.bf16.msra.mxu0 %v1544
  %1592 = vmatprep.subr.bf16.mxu0 0
  %1593 = vmatpush2.bf16.msra.mxu0 %v1559
  %1594 = vmatprep.subr.bf16.mxu0 0
  %1595 = vmatpush2.bf16.msra.mxu0 %v1558
  %1596 = vmatprep.subr.bf16.mxu0 0
  %1597 = vmatpush2.bf16.msra.mxu0 %v1557
  %1598 = vmatprep.subr.bf16.mxu0 0
  %1599 = vmatpush2.bf16.msra.mxu0 %v1556
  %1600 = vmatprep.subr.bf16.mxu0 0
  %1601 = vmatpush2.bf16.msra.mxu0 %v1555
  %1602 = vmatprep.subr.bf16.mxu0 0
  %1603 = vmatpush2.bf16.msra.mxu0 %v1554
  %1604 = vmatprep.subr.bf16.mxu0 0
  %1605 = vmatpush2.bf16.msra.mxu0 %v1553
  %1606 = vmatprep.subr.bf16.mxu0 0
  %1607 = vmatpush2.bf16.msra.mxu0 %v1552
  %1608 = vmatprep.mubr.bf16.mxu0 %v1264
  %1609 = vmatmul.mubr.bf16.gmra.mxu0 %v1263
  %v1610 = vpop.f32.mrf.mxu0
  %v1611 = vadd.f32 %v1478, %v1610
  %v1612 = vpop.f32.mrf.mxu0
  %v1613 = vpop.f32.mrf.mxu0
  %v1614 = vpop.f32.mrf.mxu0
  %1615 = vdwg.mxu0
  %v1616 = vmax.f32 %v1611, 0.0
  %v1617 = vpack.c.bf16 %v1440, %v1440
  %v1618 = vld [vmem:[%s11] sm:$0xf]
  %v1619 = vld [vmem:[%s11 + $0x4] sm:$0xf]
  %v1620 = vld [vmem:[%s11 + $0x8] sm:$0xf]
  %v1621 = vld [vmem:[%s11 + $0xc] sm:$0xf]
  %v1622 = vld [vmem:[%s11 + $0x10] sm:$0xf]
  %v1623 = vld [vmem:[%s11 + $0x14] sm:$0xf]
  %v1624 = vld [vmem:[%s11 + $0x18] sm:$0xf]
  %v1625 = vld [vmem:[%s11 + $0x1c] sm:$0xf]
  %v1626 = vld [vmem:[%s11 + $0x20] sm:$0xf]
  %v1627 = vld [vmem:[%s11 + $0x24] sm:$0xf]
  %v1628 = vld [vmem:[%s11 + $0x28] sm:$0xf]
  %v1629 = vld [vmem:[%s11 + $0x2c] sm:$0xf]
  %v1630 = vld [vmem:[%s11 + $0x30] sm:$0xf]
  %v1631 = vld [vmem:[%s11 + $0x34] sm:$0xf]
  %v1632 = vld [vmem:[%s11 + $0x38] sm:$0xf]
  %v1633 = vld [vmem:[%s11 + $0x3c] sm:$0xf]
  %v1634 = vpack.c.bf16 %v1616, %v1616
  %v1635 = vld [vmem:[%s12] sm:$0xf]
  %v1636 = vld [vmem:[%s12 + $0x4] sm:$0xf]
  %v1637 = vld [vmem:[%s12 + $0x8] sm:$0xf]
  %v1638 = vld [vmem:[%s12 + $0xc] sm:$0xf]
  %v1639 = vld [vmem:[%s12 + $0x10] sm:$0xf]
  %v1640 = vld [vmem:[%s12 + $0x14] sm:$0xf]
  %v1641 = vld [vmem:[%s12 + $0x18] sm:$0xf]
  %v1642 = vld [vmem:[%s12 + $0x1c] sm:$0xf]
  %v1643 = vld [vmem:[%s12 + $0x20] sm:$0xf]
  %v1644 = vld [vmem:[%s12 + $0x24] sm:$0xf]
  %v1645 = vld [vmem:[%s12 + $0x28] sm:$0xf]
  %v1646 = vld [vmem:[%s12 + $0x2c] sm:$0xf]
  %v1647 = vld [vmem:[%s12 + $0x30] sm:$0xf]
  %v1648 = vld [vmem:[%s12 + $0x34] sm:$0xf]
  %v1649 = vld [vmem:[%s12 + $0x38] sm:$0xf]
  %v1650 = vld [vmem:[%s12 + $0x3c] sm:$0xf]
  %v1667 = vunpack.c.l.b16 %v1635
  %v1668 = vunpack.c.l.b16 %v1636
  %v1669 = vunpack.c.l.b16 %v1637
  %v1670 = vunpack.c.l.b16 %v1638
  %v1671 = vunpack.c.l.b16 %v1639
  %v1672 = vunpack.c.l.b16 %v1640
  %v1673 = vunpack.c.l.b16 %v1641
  %v1674 = vunpack.c.l.b16 %v1642
  %v1675 = vunpack.c.l.b16 %v1643
  %v1676 = vunpack.c.l.b16 %v1644
  %v1677 = vunpack.c.l.b16 %v1645
  %v1678 = vunpack.c.l.b16 %v1646
  %v1679 = vunpack.c.l.b16 %v1647
  %v1680 = vunpack.c.l.b16 %v1648
  %v1681 = vunpack.c.l.b16 %v1649
  %v1682 = vunpack.c.l.b16 %v1650
  %v1683 = vpack.c.b16 %v1668, %v1667
  %v1684 = vpack.c.b16 %v1670, %v1669
  %v1685 = vpack.c.b16 %v1672, %v1671
  %v1686 = vpack.c.b16 %v1674, %v1673
  %v1687 = vpack.c.b16 %v1676, %v1675
  %v1688 = vpack.c.b16 %v1678, %v1677
  %v1689 = vpack.c.b16 %v1680, %v1679
  %v1690 = vpack.c.b16 %v1682, %v1681
  %1699 = vmatprep.subr.bf16.mxu0 0
  %1700 = vmatpush1.bf16.msra.mxu0 %v1690
  %1701 = vmatprep.subr.bf16.mxu0 0
  %1702 = vmatpush1.bf16.msra.mxu0 %v1689
  %1703 = vmatprep.subr.bf16.mxu0 0
  %1704 = vmatpush1.bf16.msra.mxu0 %v1688
  %1705 = vmatprep.subr.bf16.mxu0 0
  %1706 = vmatpush1.bf16.msra.mxu0 %v1687
  %1707 = vmatprep.subr.bf16.mxu0 0
  %1708 = vmatpush1.bf16.msra.mxu0 %v1686
  %1709 = vmatprep.subr.bf16.mxu0 0
  %1710 = vmatpush1.bf16.msra.mxu0 %v1685
  %1711 = vmatprep.subr.bf16.mxu0 0
  %1712 = vmatpush1.bf16.msra.mxu0 %v1684
  %1713 = vmatprep.subr.bf16.mxu0 0
  %1714 = vmatpush1.bf16.msra.mxu0 %v1683
  %1715 = vmatprep.subr.bf16.mxu0 0
  %1716 = vmatpush2.bf16.msra.mxu0 0
  %1717 = vmatprep.subr.bf16.mxu0 0
  %1718 = vmatpush2.bf16.msra.mxu0 0
  %1719 = vmatprep.subr.bf16.mxu0 0
  %1720 = vmatpush2.bf16.msra.mxu0 0
  %1721 = vmatprep.subr.bf16.mxu0 0
  %1722 = vmatpush2.bf16.msra.mxu0 0
  %1723 = vmatprep.subr.bf16.mxu0 0
  %1724 = vmatpush2.bf16.msra.mxu0 0
  %1725 = vmatprep.subr.bf16.mxu0 0
  %1726 = vmatpush2.bf16.msra.mxu0 0
  %1727 = vmatprep.subr.bf16.mxu0 0
  %1728 = vmatpush2.bf16.msra.mxu0 0
  %1729 = vmatprep.subr.bf16.mxu0 0
  %1730 = vmatpush2.bf16.msra.mxu0 0
  %1731 = vmatprep.mubr.bf16.mxu0 0
  %1732 = vmatmul.mubr.bf16.gmra.mxu0 %v1634
  %v1733 = vpop.f32.mrf.mxu0
  %v1734 = vadd.f32 0.0, %v1733
  %v1735 = vpop.f32.mrf.mxu0
  %v1736 = vpop.f32.mrf.mxu0
  %v1737 = vpop.f32.mrf.mxu0
  %1738 = vdwg.mxu0
  %v1755 = vunpack.c.l.b16 %v1618
  %v1756 = vunpack.c.l.b16 %v1619
  %v1757 = vunpack.c.l.b16 %v1620
  %v1758 = vunpack.c.l.b16 %v1621
  %v1759 = vunpack.c.l.b16 %v1622
  %v1760 = vunpack.c.l.b16 %v1623
  %v1761 = vunpack.c.l.b16 %v1624
  %v1762 = vunpack.c.l.b16 %v1625
  %v1763 = vunpack.c.l.b16 %v1626
  %v1764 = vunpack.c.l.b16 %v1627
  %v1765 = vunpack.c.l.b16 %v1628
  %v1766 = vunpack.c.l.b16 %v1629
  %v1767 = vunpack.c.l.b16 %v1630
  %v1768 = vunpack.c.l.b16 %v1631
  %v1769 = vunpack.c.l.b16 %v1632
  %v1770 = vunpack.c.l.b16 %v1633
  %v1771 = vpack.c.b16 %v1756, %v1755
  %v1772 = vpack.c.b16 %v1758, %v1757
  %v1773 = vpack.c.b16 %v1760, %v1759
  %v1774 = vpack.c.b16 %v1762, %v1761
  %v1775 = vpack.c.b16 %v1764, %v1763
  %v1776 = vpack.c.b16 %v1766, %v1765
  %v1777 = vpack.c.b16 %v1768, %v1767
  %v1778 = vpack.c.b16 %v1770, %v1769
  %1787 = vmatprep.subr.bf16.mxu0 0
  %1788 = vmatpush1.bf16.msra.mxu0 %v1778
  %1789 = vmatprep.subr.bf16.mxu0 0
  %1790 = vmatpush1.bf16.msra.mxu0 %v1777
  %1791 = vmatprep.subr.bf16.mxu0 0
  %1792 = vmatpush1.bf16.msra.mxu0 %v1776
  %1793 = vmatprep.subr.bf16.mxu0 0
  %1794 = vmatpush1.bf16.msra.mxu0 %v1775
  %1795 = vmatprep.subr.bf16.mxu0 0
  %1796 = vmatpush1.bf16.msra.mxu0 %v1774
  %1797 = vmatprep.subr.bf16.mxu0 0
  %1798 = vmatpush1.bf16.msra.mxu0 %v1773
  %1799 = vmatprep.subr.bf16.mxu0 0
  %1800 = vmatpush1.bf16.msra.mxu0 %v1772
  %1801 = vmatprep.subr.bf16.mxu0 0
  %1802 = vmatpush1.bf16.msra.mxu0 %v1771
  %1803 = vmatprep.subr.bf16.mxu0 0
  %1804 = vmatpush2.bf16.msra.mxu0 0
  %1805 = vmatprep.subr.bf16.mxu0 0
  %1806 = vmatpush2.bf16.msra.mxu0 0
  %1807 = vmatprep.subr.bf16.mxu0 0
  %1808 = vmatpush2.bf16.msra.mxu0 0
  %1809 = vmatprep.subr.bf16.mxu0 0
  %1810 = vmatpush2.bf16.msra.mxu0 0
  %1811 = vmatprep.subr.bf16.mxu0 0
  %1812 = vmatpush2.bf16.msra.mxu0 0
  %1813 = vmatprep.subr.bf16.mxu0 0
  %1814 = vmatpush2.bf16.msra.mxu0 0
  %1815 = vmatprep.subr.bf16.mxu0 0
  %1816 = vmatpush2.bf16.msra.mxu0 0
  %1817 = vmatprep.subr.bf16.mxu0 0
  %1818 = vmatpush2.bf16.msra.mxu0 0
  %1819 = vmatprep.mubr.bf16.mxu0 0
  %1820 = vmatmul.mubr.bf16.gmra.mxu0 %v1617
  %v1821 = vpop.f32.mrf.mxu0
  %v1822 = vadd.f32 %v1734, %v1821
  %v1823 = vpop.f32.mrf.mxu0
  %v1824 = vpop.f32.mrf.mxu0
  %v1825 = vpop.f32.mrf.mxu0
  %1826 = vdwg.mxu0
  %v1827 = vld [vmem:[%s13] sm:$0x1]
  %v1829 = vlaneseq
  %v1830 = vshrl.u32 %v1829, 7
  %v1831 = vsub.s32 0, %v1830
  %v1832 = vrot.slane %v1827, %v1831
  %v1834 = vadd.f32 %v1822, %v1832
  %vm1835 = vcmask 9216
  %1836 = vst.msk [vmem:[%s14] sm:$0x3] %vm1835, %v1834
  // Predicated region
  $region58: #{critic_forward.1} parent=0 // pred_check
    _
  $region59: #{critic_forward.1} parent=0 // pred_check_branch
    %1838 = sbr.rel (0) target = $region61
  $region60: #{critic_forward.1} parent=0 // pred_region
    _
  $region61: #{critic_forward.1} parent=0 // pred_fallthru
    _
  // Predicated region
  $region62: #{critic_forward.1} parent=0 // pred_check
    _
  $region63: #{critic_forward.1} parent=0 // pred_check_branch
    %1840 = sbr.rel (0) target = $region65
  $region64: #{critic_forward.1} parent=0 // pred_region
    _
  $region65: #{critic_forward.1} parent=0 // pred_fallthru
    _

</llo_original>
